<compile_context>
chip_gen: v5e
topology: v5e:2x2
jax: 0.10.0
libtpu: 0.0.40
codegen_flags: <defaults>
</compile_context>

<pallas_src>
import functools

import jax
import jax.numpy as jnp
import numpy as np
from jax.experimental import pallas as pl
from jax.experimental.pallas import tpu as pltpu

C_PAD = 128   # lane-dense padded feature width (all layer dims <= 128 here)


def _round_up(v, m):
    return ((v + m - 1) // m) * m


def _pick_tile(n):
    # Perf review: target 512 tiles (less x re-read + fewer grid steps), but
    # keep >= 2 row tiles so v7x megacore can split the "parallel" axis.
    if n >= 1024:
        return 512
    if n >= 512:
        return 256
    return 128


# ----------------------------------------------------------------------------
# Pallas kernel: one GraphConv layer, tiled over (dst rows, non-empty src tiles)
# ----------------------------------------------------------------------------
def _graph_conv_kernel(tids_ref, cnts_ref, a_ref, xs_ref, nin_ref, w_ref,
                       b_ref, *rest, residual_mode: str, apply_relu: bool):
    if residual_mode == "linear":
        xd_ref, wres_ref, o_ref, acc_ref = rest
    elif residual_mode == "identity":
        xd_ref, o_ref, acc_ref = rest
    else:
        o_ref, acc_ref = rest

    i = pl.program_id(0)          # destination-row tile
    k = pl.program_id(1)          # position in this row's non-empty-tile list
    n_valid = cnts_ref[i]         # number of non-empty source tiles for row i

    @pl.when(k == 0)
    def _():
        # Fresh write instead of zero-fill + reload.  If this row tile has no
        # non-empty source tiles at all, tile_ids[i, 0] points at an all-zero
        # A block, so the product is correctly zero.
        acc_ref[...] = jnp.dot(a_ref[...], xs_ref[...],
                               preferred_element_type=jnp.float32)

    @pl.when(jnp.logical_and(k > 0, k < n_valid))
    def _():
        # bf16 A-tile @ bf16 x-tile -> f32 accumulation on the MXU; padded
        # (ragged) steps are skipped entirely.
        acc_ref[...] += jnp.dot(a_ref[...], xs_ref[...],
                                preferred_element_type=jnp.float32)

    @pl.when(k == pl.num_programs(1) - 1)
    def _():
        agg = acc_ref[...]                                        # [TM, Cin_p]
        # fc: (agg @ W + b), then destination-side normalization (matches the
        # reference ordering: bias is scaled by norm_in).
        out = jnp.dot(agg, w_ref[...],
                      preferred_element_type=jnp.float32) + b_ref[...]
        out = out * nin_ref[...]
        if residual_mode == "linear":       # res_fc = Linear(in, out, bias=False)
            out = out + jnp.dot(xd_ref[...], wres_ref[...],
                                preferred_element_type=jnp.float32)
        elif residual_mode == "identity":   # res_fc = Identity()
            out = out + xd_ref[...].astype(jnp.float32)
        if apply_relu:
            out = jnp.maximum(out, 0.0)
        o_ref[...] = out.astype(o_ref.dtype)


def graph_conv(graph, h, w, b, w_res, *, residual_mode, apply_relu, out_dtype):
    """One GraphConv layer.

    graph: dict from preprocess_graph (bf16 A_scaled, norm_in, tile schedule).
    h: [Np, C_PAD] bf16 node features (also the residual input).
    w: [C_PAD, C_PAD] f32, b: [1, C_PAD] f32, w_res: [C_PAD, C_PAD] bf16.
    """
    tm = tk = graph["tile"]
    n_pad = graph["n_pad"]
    max_k = graph["max_k"]
    c_pad = w.shape[0]
    cout_pad = w.shape[1]

    # Scalar-prefetch refs (tile_ids, counts) are appended to every index_map.
    def a_map(i, k, tids, cnts):
        return (i, tids[i, k])          # data-dependent source-tile index

    def xs_map(i, k, tids, cnts):
        return (tids[i, k], 0)

    def row_map(i, k, tids, cnts):
        return (i, 0)

    def fix_map(i, k, tids, cnts):
        return (0, 0)

    in_arrays = [graph["a_scaled"], h, graph["norm_in"], w, b]
    in_specs = [
        # NOTE: if profiles show exposed DMA at large tiles, sweep
        # pipeline_mode=pl.Buffered(3) on this (dominant) stream.
        pl.BlockSpec((tm, tk), a_map),              # A[dst, src] tile (bf16)
        pl.BlockSpec((tk, c_pad), xs_map),          # src-node features (bf16)
        pl.BlockSpec((tm, 1), row_map),             # dst-side norm (f32)
        pl.BlockSpec((c_pad, cout_pad), fix_map),   # fc weight
        pl.BlockSpec((1, cout_pad), fix_map),       # fc bias
    ]
    if residual_mode == "linear":
        in_arrays += [h, w_res]
        in_specs += [
            pl.BlockSpec((tm, c_pad), row_map),         # dst features
            pl.BlockSpec((c_pad, cout_pad), fix_map),   # residual weight
        ]
    elif residual_mode == "identity":
        in_arrays += [h]
        in_specs += [pl.BlockSpec((tm, c_pad), row_map)]
    # residual_mode == "none": no extra operands DMA'd at all.

    kernel = functools.partial(_graph_conv_kernel,
                               residual_mode=residual_mode,
                               apply_relu=apply_relu)
    return pl.pallas_call(
        kernel,
        out_shape=jax.ShapeDtypeStruct((n_pad, cout_pad), out_dtype),
        grid_spec=pltpu.PrefetchScalarGridSpec(
            num_scalar_prefetch=2,
            grid=(n_pad // tm, max_k),
            in_specs=in_specs,
            out_specs=pl.BlockSpec((tm, cout_pad), row_map),
            scratch_shapes=[pltpu.VMEM((tm, c_pad), jnp.float32)],
        ),
        compiler_params=pltpu.CompilerParams(
            dimension_semantics=("parallel", "arbitrary")),
    )(graph["tile_ids"], graph["counts"], *in_arrays)


# ----------------------------------------------------------------------------
# Per-graph preprocessing (computed ONCE, reused across forward calls)
# ----------------------------------------------------------------------------
def preprocess_graph(edge_index, num_nodes):
    tile = _pick_tile(num_nodes)
    n_pad = _round_up(max(num_nodes, tile), tile)

    row = jnp.asarray(edge_index[0])   # src
    col = jnp.asarray(edge_index[1])   # dst

    deg_out = jnp.zeros((n_pad,), jnp.float32).at[row].add(1.0)   # src out-deg
    deg_in = jnp.zeros((n_pad,), jnp.float32).at[col].add(1.0)    # dst in-deg
    norm_out = jax.lax.rsqrt(jnp.maximum(deg_out, 1.0))
    norm_in = jax.lax.rsqrt(jnp.maximum(deg_in, 1.0)).reshape(n_pad, 1)

    # A_scaled[dst, src] = multiplicity(dst<-src) * deg_out(src)^-0.5.
    # Source-side norm is folded directly into the scatter values (no dense
    # f32 A + broadcast-mul passes), cast once to bf16 for the MXU feed.
    a_scaled = (jnp.zeros((n_pad, n_pad), jnp.float32)
                .at[col, row].add(norm_out[row])).astype(jnp.bfloat16)

    # Block-sparse schedule: compacted list of non-empty source tiles per
    # destination-row tile (host side; part of the cached graph object).
    row_np = np.asarray(row)
    col_np = np.asarray(col)
    num_rt = n_pad // tile
    num_kt = n_pad // tile
    nonempty = np.zeros((num_rt, num_kt), dtype=bool)
    if row_np.size:
        nonempty[col_np // tile, row_np // tile] = True
    counts = nonempty.sum(axis=1).astype(np.int32)
    max_k = max(1, int(counts.max()))
    tile_ids = np.zeros((num_rt, max_k), dtype=np.int32)
    for i in range(num_rt):
        ids = np.flatnonzero(nonempty[i])
        if ids.size:
            tile_ids[i, :ids.size] = ids
            # Pad by repeating the last valid id: the block index is unchanged
            # on padded steps so Pallas skips the redundant DMA, and the
            # compute there is @pl.when-guarded off in the kernel.
            tile_ids[i, ids.size:] = ids[-1]
    return dict(tile=tile, n_pad=n_pad, max_k=max_k,
                a_scaled=a_scaled, norm_in=norm_in,
                tile_ids=jnp.asarray(tile_ids), counts=jnp.asarray(counts))


# ----------------------------------------------------------------------------
# Parameter setup (mirrors GCN.__init__ shapes / flags)
# ----------------------------------------------------------------------------
def init_linear(key, fan_in, fan_out, bias=True):
    kw, kb = jax.random.split(key)
    bound = 1.0 / np.sqrt(fan_in)
    w = jax.random.uniform(kw, (fan_in, fan_out), jnp.float32, -bound, bound)
    b = (jax.random.uniform(kb, (1, fan_out), jnp.float32, -bound, bound)
         if bias else None)
    return w, b


def init_gcn_params(key, in_dim, num_hidden, out_dim, num_layers,
                    residual, encoding=False):
    layers = []
    last_activation = encoding          # ReLU on last layer only if encoding
    last_residual = encoding and residual

    def make_layer(k, cin, cout, res, act):
        kf, kr = jax.random.split(k)
        w, b = init_linear(kf, cin, cout, bias=True)
        if res:
            if cin != cout:
                w_res, _ = init_linear(kr, cin, cout, bias=False)
                mode = "linear"
            else:
                w_res = None
                mode = "identity"
        else:
            w_res = None
            mode = "none"
        return dict(w=w, b=b, w_res=w_res, residual_mode=mode, apply_relu=act)

    keys = jax.random.split(key, num_layers)
    if num_layers == 1:
        layers.append(make_layer(keys[0], in_dim, out_dim,
                                 last_residual, last_activation))
    else:
        layers.append(make_layer(keys[0], in_dim, num_hidden, residual, True))
        for l in range(1, num_layers - 1):
            layers.append(make_layer(keys[l], num_hidden, num_hidden,
                                     residual, True))
        layers.append(make_layer(keys[-1], num_hidden, out_dim,
                                 last_residual, last_activation))
    return layers


# ----------------------------------------------------------------------------
# Forward pass: graph preprocessing hoisted/cached, layers run as Pallas calls
# ----------------------------------------------------------------------------
def gcn_forward(params, x, graph):
    # TODO(synk): F.dropout(training=True) has no deterministic equivalent
    # here; dropout behaves as eval-mode (identity). c1/c2 and head=Identity
    # do not affect the forward pass.
    n, in_dim = x.shape
    n_pad = graph["n_pad"]

    # bf16 lane-dense feature slab; the kernels keep all intermediates in bf16
    # (f32 accumulation on the MXU) and only the final layer emits f32.
    h = (jnp.zeros((n_pad, C_PAD), jnp.bfloat16)
         .at[:n, :in_dim].set(x.astype(jnp.bfloat16)))

    num_layers = len(params)
    for li, p in enumerate(params):
        cin, cout = p["w"].shape
        w = jnp.zeros((C_PAD, C_PAD), jnp.float32).at[:cin, :cout].set(p["w"])
        b = jnp.zeros((1, C_PAD), jnp.float32).at[:, :cout].set(p["b"])
        w_res = None
        if p["residual_mode"] == "linear":
            # residual matmul consumes bf16 dst features -> bf16 weights too
            w_res = (jnp.zeros((C_PAD, C_PAD), jnp.float32)
                     .at[:cin, :cout].set(p["w_res"])).astype(jnp.bfloat16)
        out_dtype = jnp.float32 if li == num_layers - 1 else jnp.bfloat16
        h = graph_conv(graph, h, w, b, w_res,
                       residual_mode=p["residual_mode"],
                       apply_relu=p["apply_relu"],
                       out_dtype=out_dtype)

    out_dim = params[-1]["w"].shape[1]
    return h[:n, :out_dim]


# ----------------------------------------------------------------------------
# Pure-JAX reference (scatter-based, f32, mirrors MessagePassing semantics)
# ----------------------------------------------------------------------------
def gcn_reference(params, x, edge_index):
    row, col = edge_index[0], edge_index[1]
    n = x.shape[0]
    h = x
    for p in params:
        deg_out = jnp.zeros((n,), jnp.float32).at[row].add(1.0)
        deg_in = jnp.zeros((n,), jnp.float32).at[col].add(1.0)
        norm_out = jnp.maximum(deg_out, 1.0) ** -0.5
        norm_in = jnp.maximum(deg_in, 1.0) ** -0.5
        xn = h * norm_out[:, None]
        agg = jnp.zeros((n, h.shape[1]), jnp.float32).at[col].add(xn[row])
        out = agg @ p["w"] + p["b"]
        out = out * norm_in[:, None]
        if p["residual_mode"] == "linear":
            out = out + h @ p["w_res"]
        elif p["residual_mode"] == "identity":
            out = out + h
        if p["apply_relu"]:
            out = jnp.maximum(out, 0.0)
        h = out
    return h


# ----------------------------------------------------------------------------
if __name__ == "__main__":
    key = jax.random.PRNGKey(0)
    k_x, k_row, k_col, k_params = jax.random.split(key, 4)

    # Small synthetic graph (256 nodes -> 2x2 tiles of 128 per layer).
    N, E = 256, 1024
    IN_DIM, NUM_HIDDEN, OUT_DIM, NUM_LAYERS = 16, 32, 32, 2

    x = jax.random.normal(k_x, (N, IN_DIM), jnp.float32)
    row = jax.random.randint(k_row, (E,), 0, N, jnp.int32)
    col = jax.random.randint(k_col, (E,), 0, N, jnp.int32)
    edge_index = jnp.stack([row, col], axis=0)          # [2, E]

    params = init_gcn_params(k_params, IN_DIM, NUM_HIDDEN, OUT_DIM,
                             NUM_LAYERS, residual=True, encoding=False)

    graph = preprocess_graph(edge_index, N)             # built once, reused
    out = gcn_forward(params, x, graph)
    out = jax.block_until_ready(out)

    ref = jax.block_until_ready(gcn_reference(params, x, edge_index))
    # bf16 adjacency / features / intermediates with f32 accumulation:
    # tolerance loosened accordingly.
    np.testing.assert_allclose(np.asarray(out), np.asarray(ref),
                               rtol=3e-2, atol=3e-2)
    print("KERNEL_OK")
</pallas_src>

<mosaic_0001>
module attributes {stable_mosaic.version = 11 : i64} {
  func.func @_graph_conv_kernel(%arg0: i32, %arg1: i32, %arg2: memref<2x2xi32, #tpu.memory_space<smem>>, %arg3: memref<2xi32, #tpu.memory_space<smem>>, %arg4: memref<128x128xbf16, #tpu.memory_space<vmem>>, %arg5: memref<128x128xbf16, #tpu.memory_space<vmem>>, %arg6: memref<128x1xf32, #tpu.memory_space<vmem>>, %arg7: memref<128x128xf32, #tpu.memory_space<vmem>>, %arg8: memref<1x128xf32, #tpu.memory_space<vmem>>, %arg9: memref<128x128xbf16, #tpu.memory_space<vmem>>, %arg10: memref<128x128xbf16, #tpu.memory_space<vmem>>, %arg11: memref<128x128xbf16, #tpu.memory_space<vmem>>, %arg12: memref<128x128xf32, #tpu.memory_space<vmem>>) attributes {dimension_semantics = [#tpu.dimension_semantics<parallel>, #tpu.dimension_semantics<arbitrary>], iteration_bounds = array<i64: 2, 2>, scalar_prefetch = 2 : i64, scratch_operands = 1 : i64, tpu.core_type = #tpu.core_type<tc>, window_params = [{transform_indices = @transform_0, window_bounds = array<i64: 128, 128>}, {transform_indices = @transform_1, window_bounds = array<i64: 128, 128>}, {transform_indices = @transform_2, window_bounds = array<i64: 128, 1>}, {pipeline_mode = #tpu.pipeline_mode<synchronous>, transform_indices = @transform_3, window_bounds = array<i64: 128, 128>}, {pipeline_mode = #tpu.pipeline_mode<synchronous>, transform_indices = @transform_4, window_bounds = array<i64: 1, 128>}, {transform_indices = @transform_5, window_bounds = array<i64: 128, 128>}, {pipeline_mode = #tpu.pipeline_mode<synchronous>, transform_indices = @transform_6, window_bounds = array<i64: 128, 128>}, {transform_indices = @transform_7, window_bounds = array<i64: 128, 128>}]} {
    %0 = arith.index_cast %arg0 : i32 to index
    %1 = memref.load %arg3[%0] : memref<2xi32, #tpu.memory_space<smem>>
    %c0_i32 = arith.constant 0 : i32
    %2 = arith.cmpi eq, %arg1, %c0_i32 : i32
    %3 = arith.extui %2 : i1 to i32
    %c0_i32_0 = arith.constant 0 : i32
    %4 = arith.cmpi ne, %3, %c0_i32_0 : i32
    scf.if %4 {
      %c0 = arith.constant 0 : index
      %c0_4 = arith.constant 0 : index
      %13 = vector.load %arg4[%c0, %c0_4] : memref<128x128xbf16, #tpu.memory_space<vmem>>, vector<128x128xbf16>
      %c0_5 = arith.constant 0 : index
      %c0_6 = arith.constant 0 : index
      %14 = vector.load %arg5[%c0_5, %c0_6] : memref<128x128xbf16, #tpu.memory_space<vmem>>, vector<128x128xbf16>
      %cst = arith.constant dense<0.000000e+00> : vector<128x128xf32>
      %15 = tpu.matmul %13, %14, %cst {dimension_numbers = #tpu.dot_dimension_numbers<[1], [0], [0], [1], [0, 0, 1, 1], [], []>} : vector<128x128xbf16>, vector<128x128xbf16>, vector<128x128xf32> -> vector<128x128xf32>
      %c0_7 = arith.constant 0 : index
      %c0_8 = arith.constant 0 : index
      %16 = vector.load %arg12[%c0_7, %c0_8] : memref<128x128xf32, #tpu.memory_space<vmem>>, vector<128x128xf32>
      tpu.vector_store %arg12[%c0_7, %c0_8], %15 {strides = array<i32>} : memref<128x128xf32, #tpu.memory_space<vmem>>, vector<128x128xf32>,
    } else {
    }
    %c0_i32_1 = arith.constant 0 : i32
    %5 = arith.cmpi sgt, %arg1, %c0_i32_1 : i32
    %6 = arith.cmpi slt, %arg1, %1 : i32
    %7 = arith.andi %5, %6 : i1
    %8 = arith.extui %7 : i1 to i32
    %c0_i32_2 = arith.constant 0 : i32
    %9 = arith.cmpi ne, %8, %c0_i32_2 : i32
    scf.if %9 {
      %c0 = arith.constant 0 : index
      %c0_4 = arith.constant 0 : index
      %13 = vector.load %arg12[%c0, %c0_4] : memref<128x128xf32, #tpu.memory_space<vmem>>, vector<128x128xf32>
      %c0_5 = arith.constant 0 : index
      %c0_6 = arith.constant 0 : index
      %14 = vector.load %arg4[%c0_5, %c0_6] : memref<128x128xbf16, #tpu.memory_space<vmem>>, vector<128x128xbf16>
      %c0_7 = arith.constant 0 : index
      %c0_8 = arith.constant 0 : index
      %15 = vector.load %arg5[%c0_7, %c0_8] : memref<128x128xbf16, #tpu.memory_space<vmem>>, vector<128x128xbf16>
      %cst = arith.constant dense<0.000000e+00> : vector<128x128xf32>
      %16 = tpu.matmul %14, %15, %cst {dimension_numbers = #tpu.dot_dimension_numbers<[1], [0], [0], [1], [0, 0, 1, 1], [], []>} : vector<128x128xbf16>, vector<128x128xbf16>, vector<128x128xf32> -> vector<128x128xf32>
      %17 = arith.addf %13, %16 : vector<128x128xf32>
      %c0_9 = arith.constant 0 : index
      %c0_10 = arith.constant 0 : index
      %18 = vector.load %arg12[%c0_9, %c0_10] : memref<128x128xf32, #tpu.memory_space<vmem>>, vector<128x128xf32>
      tpu.vector_store %arg12[%c0_9, %c0_10], %17 {strides = array<i32>} : memref<128x128xf32, #tpu.memory_space<vmem>>, vector<128x128xf32>,
    } else {
    }
    %c1_i32 = arith.constant 1 : i32
    %10 = arith.cmpi eq, %arg1, %c1_i32 : i32
    %11 = arith.extui %10 : i1 to i32
    %c0_i32_3 = arith.constant 0 : i32
    %12 = arith.cmpi ne, %11, %c0_i32_3 : i32
    scf.if %12 {
      %c0 = arith.constant 0 : index
      %c0_4 = arith.constant 0 : index
      %13 = vector.load %arg12[%c0, %c0_4] : memref<128x128xf32, #tpu.memory_space<vmem>>, vector<128x128xf32>
      %c0_5 = arith.constant 0 : index
      %c0_6 = arith.constant 0 : index
      %14 = vector.load %arg7[%c0_5, %c0_6] : memref<128x128xf32, #tpu.memory_space<vmem>>, vector<128x128xf32>
      %cst = arith.constant dense<0.000000e+00> : vector<128x128xf32>
      %15 = tpu.matmul %13, %14, %cst {dimension_numbers = #tpu.dot_dimension_numbers<[1], [0], [0], [1], [0, 0, 1, 1], [], []>} : vector<128x128xf32>, vector<128x128xf32>, vector<128x128xf32> -> vector<128x128xf32>
      %c0_7 = arith.constant 0 : index
      %c0_8 = arith.constant 0 : index
      %16 = vector.load %arg8[%c0_7, %c0_8] : memref<1x128xf32, #tpu.memory_space<vmem>>, vector<1x128xf32>
      %17 = vector.broadcast %16 : vector<1x128xf32> to vector<128x128xf32>
      %18 = arith.addf %15, %17 : vector<128x128xf32>
      %c0_9 = arith.constant 0 : index
      %c0_10 = arith.constant 0 : index
      %19 = vector.load %arg6[%c0_9, %c0_10] : memref<128x1xf32, #tpu.memory_space<vmem>>, vector<128x1xf32>
      %20 = vector.broadcast %19 : vector<128x1xf32> to vector<128x128xf32>
      %21 = arith.mulf %18, %20 : vector<128x128xf32>
      %c0_11 = arith.constant 0 : index
      %c0_12 = arith.constant 0 : index
      %22 = vector.load %arg9[%c0_11, %c0_12] : memref<128x128xbf16, #tpu.memory_space<vmem>>, vector<128x128xbf16>
      %c0_13 = arith.constant 0 : index
      %c0_14 = arith.constant 0 : index
      %23 = vector.load %arg10[%c0_13, %c0_14] : memref<128x128xbf16, #tpu.memory_space<vmem>>, vector<128x128xbf16>
      %cst_15 = arith.constant dense<0.000000e+00> : vector<128x128xf32>
      %24 = tpu.matmul %22, %23, %cst_15 {dimension_numbers = #tpu.dot_dimension_numbers<[1], [0], [0], [1], [0, 0, 1, 1], [], []>} : vector<128x128xbf16>, vector<128x128xbf16>, vector<128x128xf32> -> vector<128x128xf32>
      %25 = arith.addf %21, %24 : vector<128x128xf32>
      %cst_16 = arith.constant 0.000000e+00 : f32
      %26 = vector.broadcast %cst_16 : f32 to vector<128x128xf32>
      %27 = arith.maximumf %25, %26 : vector<128x128xf32>
      %28 = arith.truncf %27 : vector<128x128xf32> to vector<128x128xbf16>
      %c0_17 = arith.constant 0 : index
      %c0_18 = arith.constant 0 : index
      %29 = vector.load %arg11[%c0_17, %c0_18] : memref<128x128xbf16, #tpu.memory_space<vmem>>, vector<128x128xbf16>
      tpu.vector_store %arg11[%c0_17, %c0_18], %28 {strides = array<i32>} : memref<128x128xbf16, #tpu.memory_space<vmem>>, vector<128x128xbf16>,
    } else {
    }
    return
  }
  func.func @transform_0(%arg0: i32, %arg1: i32, %arg2: memref<2x2xi32, #tpu.memory_space<smem>>, %arg3: memref<2xi32, #tpu.memory_space<smem>>) -> (i32, i32) {
    %0 = arith.index_cast %arg0 : i32 to index
    %1 = arith.index_cast %arg1 : i32 to index
    %2 = memref.load %arg2[%0, %1] : memref<2x2xi32, #tpu.memory_space<smem>>
    %c0_i32 = arith.constant 0 : i32
    return %arg0, %2 : i32, i32
  }
  func.func @transform_1(%arg0: i32, %arg1: i32, %arg2: memref<2x2xi32, #tpu.memory_space<smem>>, %arg3: memref<2xi32, #tpu.memory_space<smem>>) -> (i32, i32) {
    %0 = arith.index_cast %arg0 : i32 to index
    %1 = arith.index_cast %arg1 : i32 to index
    %2 = memref.load %arg2[%0, %1] : memref<2x2xi32, #tpu.memory_space<smem>>
    %c0_i32 = arith.constant 0 : i32
    %c0_i32_0 = arith.constant 0 : i32
    return %2, %c0_i32 : i32, i32
  }
  func.func @transform_2(%arg0: i32, %arg1: i32, %arg2: memref<2x2xi32, #tpu.memory_space<smem>>, %arg3: memref<2xi32, #tpu.memory_space<smem>>) -> (i32, i32) {
    %c0_i32 = arith.constant 0 : i32
    %c0_i32_0 = arith.constant 0 : i32
    return %arg0, %c0_i32 : i32, i32
  }
  func.func @transform_3(%arg0: i32, %arg1: i32, %arg2: memref<2x2xi32, #tpu.memory_space<smem>>, %arg3: memref<2xi32, #tpu.memory_space<smem>>) -> (i32, i32) {
    %c0_i32 = arith.constant 0 : i32
    %c0_i32_0 = arith.constant 0 : i32
    %c0_i32_1 = arith.constant 0 : i32
    return %c0_i32, %c0_i32_0 : i32, i32
  }
  func.func @transform_4(%arg0: i32, %arg1: i32, %arg2: memref<2x2xi32, #tpu.memory_space<smem>>, %arg3: memref<2xi32, #tpu.memory_space<smem>>) -> (i32, i32) {
    %c0_i32 = arith.constant 0 : i32
    %c0_i32_0 = arith.constant 0 : i32
    %c0_i32_1 = arith.constant 0 : i32
    return %c0_i32, %c0_i32_0 : i32, i32
  }
  func.func @transform_5(%arg0: i32, %arg1: i32, %arg2: memref<2x2xi32, #tpu.memory_space<smem>>, %arg3: memref<2xi32, #tpu.memory_space<smem>>) -> (i32, i32) {
    %c0_i32 = arith.constant 0 : i32
    %c0_i32_0 = arith.constant 0 : i32
    return %arg0, %c0_i32 : i32, i32
  }
  func.func @transform_6(%arg0: i32, %arg1: i32, %arg2: memref<2x2xi32, #tpu.memory_space<smem>>, %arg3: memref<2xi32, #tpu.memory_space<smem>>) -> (i32, i32) {
    %c0_i32 = arith.constant 0 : i32
    %c0_i32_0 = arith.constant 0 : i32
    %c0_i32_1 = arith.constant 0 : i32
    return %c0_i32, %c0_i32_0 : i32, i32
  }
  func.func @transform_7(%arg0: i32, %arg1: i32, %arg2: memref<2x2xi32, #tpu.memory_space<smem>>, %arg3: memref<2xi32, #tpu.memory_space<smem>>) -> (i32, i32) {
    %c0_i32 = arith.constant 0 : i32
    %c0_i32_0 = arith.constant 0 : i32
    return %arg0, %c0_i32 : i32, i32
  }
}

</mosaic_0001>

<llo_original>
// kernel: tpu_custom_call.1
$region0: #{tpu_custom_call.1}
  #allocation0 [shape = 'u32[]', space=smem, size = 0x4, offset = 0x4, fixed_abs, tag = 'smem constant byte address 0x4 - core index']
  #allocation1 [shape = 'u32[72,128]{1,0:T(1,128)}', space=vmem, size = 0x9000, scoped, tag = 'internal scratch']
  #allocation2 [shape = 'f32[128,128]{1,0:T(8,128)}', space=vmem, size = 0x10000, scoped, tag = 'scratch operand']
  #allocation3 [shape = 's32[1]{0}', space=sflag, size = 0x4, scoped, tag = 'scoped memory for tpu_custom_call.1']
  #allocation4 [shape = 'u8[1024]{0}', space=smem, size = 0x400, scoped, tag = 'prefetched SMEM operand 0']
  #allocation5 [shape = 'u8[512]{0}', space=smem, size = 0x200, scoped, tag = 'prefetched SMEM operand 1']
  %s0 = inlined_call_operand.vmem [shape: s32[2,2], index: 0, kind: input, shape index: {}]
  %s1 = inlined_call_operand.vmem [shape: s32[2], index: 1, kind: input, shape index: {}]
  %s2 = inlined_call_operand.vmem [shape: bf16[256,256], index: 2, kind: input, shape index: {}]
  %s3 = inlined_call_operand.hbm [shape: bf16[256,128], index: 3, kind: input, shape index: {}]
  %s4 = inlined_call_operand.vmem [shape: f32[256,1], index: 4, kind: input, shape index: {}]
  %s5 = inlined_call_operand.hbm [shape: f32[128,128], index: 5, kind: input, shape index: {}]
  %s6 = inlined_call_operand.vmem [shape: f32[1,128], index: 6, kind: input, shape index: {}]
  %s7 = inlined_call_operand.hbm [shape: bf16[256,128], index: 7, kind: input, shape index: {}]
  %s8 = inlined_call_operand.hbm [shape: bf16[128,128], index: 8, kind: input, shape index: {}]
  %s9 = inlined_call_operand.hbm [shape: bf16[256,128], index: 9, kind: output, shape index: {}]
  %s10 = sld [smem:[#allocation0]]
  $region130: #{tpu_custom_call.1} parent=0
    _
  %s12 = ssub.s32 1, %s10
  %s13 = scalar_select 0, %s12, %s10
  %s15 = sshll.u32 %s0, 4
  %s16 = int_to_ptr.vmem [resolvable:$true] %s15
  %18 = dma.vmem_to_smem %s16, 32, [#allocation4], [#allocation3]
  %s20 = sshll.u32 %s1, 4
  %s21 = int_to_ptr.vmem [resolvable:$true] %s20
  %23 = dma.vmem_to_smem %s21, 16, [#allocation5], [#allocation3]
  %25 = dma.done [#allocation3], 48
  %26 = sfence
  $region1: #{tpu_custom_call.1} parent=0
    #allocation6 [shape = 'u8[65536]{0}', space=vmem, size = 0x10000, scoped, tag = 'input window, operand 2']
    #allocation7 [shape = 'u8[65536]{0}', space=vmem, size = 0x10000, scoped, tag = 'input window, operand 3']
    #allocation8 [shape = 's32[2]{0}', space=sflag, size = 0x8, scoped, tag = 'scoped memory for tpu_custom_call.1']
    #allocation9 [shape = 's32[2]{0}', space=sflag, size = 0x8, scoped, tag = 'scoped memory for tpu_custom_call.1']
    #allocation10 [shape = 'u8[65536]{0}', space=vmem, size = 0x10000, scoped, tag = 'input window, operand 5, single buffered']
    #allocation11 [shape = 's32[1]{0}', space=sflag, size = 0x4, scoped, tag = 'scoped memory for tpu_custom_call.1']
    #allocation12 [shape = 'u8[65536]{0}', space=vmem, size = 0x10000, scoped, tag = 'input window, operand 7']
    #allocation13 [shape = 'u8[32768]{0}', space=vmem, size = 0x8000, scoped, tag = 'input window, operand 8, single buffered']
    #allocation14 [shape = 'u8[65536]{0}', space=vmem, size = 0x10000, scoped, tag = 'output window, operand 0']
    %27 = vsyncpa [#allocation8], 0
    %s28 = scalar_lea.sflag [#allocation8], 1
    %29 = vsyncpa %s28, 0
    %30 = vsyncpa [#allocation11], 0
    %31 = vsyncpa [#allocation9], 0
    %s32 = scalar_lea.sflag [#allocation9], 1
    %33 = vsyncpa %s32, 0
    loop: start=0, step=1, limit=6
    $region2: #{tpu_custom_call.1} parent=1 // loop_pre_header
      _
    $region3: #{tpu_custom_call.1} parent=1 // loop_header
      %s35 = sphi 0, %s39
      %p36 = scmp.ge.s32.totalorder %s35, 6
      %s42 = sphi 0, %s54
      %s43 = sphi 0, %s50
      %s44 = sphi 0, %s42
      %s45 = sphi 0, %s43
      %s46 = sphi 0, %s44
      %s47 = sphi 0, %s45
      %s75 = sphi 0, %s77
      %s78 = sphi 0, %s75
      %s79 = sphi 0, %s78
      %s95 = sphi 0, %s79
      %s117 = sphi 0, %s119
      %s120 = sphi 0, %s117
      %s121 = sphi 0, %s120
      %s137 = sphi 0, %s121
      %s143 = sphi 0, %s145
      %s146 = sphi 0, %s143
      %s147 = sphi 0, %s146
      %s163 = sphi 0, %s147
      %s167 = sphi 0, %s167
      %s169 = sphi 0, %s167
      %s170 = sphi 0, %s169
      %s184 = sphi 0, %s170
      %s188 = sphi 0, %s188
      %s190 = sphi 0, %s188
      %s191 = sphi 0, %s190
      %s205 = sphi 0, %s191
      %s211 = sphi 0, %s213
      %s214 = sphi 0, %s211
      %s215 = sphi 0, %s214
      %s231 = sphi 0, %s215
      %s235 = sphi 0, %s235
      %s237 = sphi 0, %s235
      %s238 = sphi 0, %s237
      %s252 = sphi 0, %s238
      %s258 = sphi 0, %s260
      %s261 = sphi 0, %s258
      %s262 = sphi 0, %s261
      %s278 = sphi 0, %s262
    $region4: #{tpu_custom_call.1} parent=1 // loop_header_branch
      %38 = sbr.rel (%p36) target = $region8
    $region5: #{tpu_custom_call.1} parent=1 // loop_body
      %s40 = ssub.s32 %s35, 1
      %s41 = ssub.s32 %s35, 2
      %s48 = sadd.s32 1, %s43
      %p49 = scmp.ge.s32.totalorder %s48, 2
      %s50 = scalar_select %p49, 0, %s48
      %s51 = sadd.s32 1, %s42
      %s52 = scalar_select %p49, %s51, %s42
      %p53 = scmp.ge.s32.totalorder %s52, 2
      %s54 = scalar_select %p53, 0, %s52
      %s55 = sshra.s32 %s43, 7
      %s56 = sand.u32 %s43, 127
      %s57 = sadd.s32 %s55, %s42
      %s58 = smul.u32 %s57, 128
      %s59 = sshra.s32 %s43, 7
      %s60 = sand.u32 %s43, 127
      %s61 = sadd.s32 %s58, %s60
      %s62 = sld [smem:[#allocation4 + %s61]]
      %s63 = sshra.s32 %s50, 7
      %s64 = sand.u32 %s50, 127
      %s65 = sadd.s32 %s63, %s54
      %s66 = smul.u32 %s65, 128
      %s67 = sshra.s32 %s50, 7
      %s68 = sand.u32 %s50, 127
      %s69 = sadd.s32 %s66, %s68
      %s70 = sld [smem:[#allocation4 + %s69]]
      %s71 = ssub.s32 %s42, %s54
      %s72 = ssub.s32 %s62, %s70
      %s73 = sor.u32 %s71, %s72
      %p74 = scmp.eq.s32.totalorder %s73, 0
      %s76 = sadd.s32 %s75, 1
      %s77 = scalar_select %p74, %s75, %s76
      %p80 = pneg %p74
      %p81 = scmp.eq.s32.totalorder %s35, 3
      %p82 = por %p80, %p81
      %p83 = scmp.ne.s32.totalorder %s75, %s78
      %p84 = scmp.eq.s32.totalorder %s35, 0
      %p85 = por %p83, %p84
      %p86 = scmp.ne.s32.totalorder %s75, %s78
      %p87 = scmp.eq.s32.totalorder %s40, 3
      %p88 = por %p86, %p87
      %p89 = scmp.ne.s32.totalorder %s78, %s79
      %p90 = scmp.eq.s32.totalorder %s40, 0
      %p91 = por %p89, %p90
      %p92 = scmp.ne.s32.totalorder %s78, %s79
      %p93 = scmp.eq.s32.totalorder %s41, 3
      %p94 = por %p92, %p93
      %p96 = scmp.ne.s32.totalorder %s79, %s95
      %p97 = scmp.eq.s32.totalorder %s41, 0
      %p98 = por %p96, %p97
      %s99 = sshra.s32 %s43, 7
      %s100 = sand.u32 %s43, 127
      %s101 = sadd.s32 %s99, %s42
      %s102 = smul.u32 %s101, 128
      %s103 = sshra.s32 %s43, 7
      %s104 = sand.u32 %s43, 127
      %s105 = sadd.s32 %s102, %s104
      %s106 = sld [smem:[#allocation4 + %s105]]
      %s107 = sshra.s32 %s50, 7
      %s108 = sand.u32 %s50, 127
      %s109 = sadd.s32 %s107, %s54
      %s110 = smul.u32 %s109, 128
      %s111 = sshra.s32 %s50, 7
      %s112 = sand.u32 %s50, 127
      %s113 = sadd.s32 %s110, %s112
      %s114 = sld [smem:[#allocation4 + %s113]]
      %s115 = ssub.s32 %s106, %s114
      %p116 = scmp.eq.s32.totalorder %s115, 0
      %s118 = sadd.s32 %s117, 1
      %s119 = scalar_select %p116, %s117, %s118
      %p122 = pneg %p116
      %p123 = scmp.eq.s32.totalorder %s35, 3
      %p124 = por %p122, %p123
      %p125 = scmp.ne.s32.totalorder %s117, %s120
      %p126 = scmp.eq.s32.totalorder %s35, 0
      %p127 = por %p125, %p126
      %p128 = scmp.ne.s32.totalorder %s117, %s120
      %p129 = scmp.eq.s32.totalorder %s40, 3
      %p130 = por %p128, %p129
      %p131 = scmp.ne.s32.totalorder %s120, %s121
      %p132 = scmp.eq.s32.totalorder %s40, 0
      %p133 = por %p131, %p132
      %p134 = scmp.ne.s32.totalorder %s120, %s121
      %p135 = scmp.eq.s32.totalorder %s41, 3
      %p136 = por %p134, %p135
      %p138 = scmp.ne.s32.totalorder %s121, %s137
      %p139 = scmp.eq.s32.totalorder %s41, 0
      %p140 = por %p138, %p139
      %s141 = ssub.s32 %s42, %s54
      %p142 = scmp.eq.s32.totalorder %s141, 0
      %s144 = sadd.s32 %s143, 1
      %s145 = scalar_select %p142, %s143, %s144
      %p148 = pneg %p142
      %p149 = scmp.eq.s32.totalorder %s35, 3
      %p150 = por %p148, %p149
      %p151 = scmp.ne.s32.totalorder %s143, %s146
      %p152 = scmp.eq.s32.totalorder %s35, 0
      %p153 = por %p151, %p152
      %p154 = scmp.ne.s32.totalorder %s143, %s146
      %p155 = scmp.eq.s32.totalorder %s40, 3
      %p156 = por %p154, %p155
      %p157 = scmp.ne.s32.totalorder %s146, %s147
      %p158 = scmp.eq.s32.totalorder %s40, 0
      %p159 = por %p157, %p158
      %p160 = scmp.ne.s32.totalorder %s146, %s147
      %p161 = scmp.eq.s32.totalorder %s41, 3
      %p162 = por %p160, %p161
      %p164 = scmp.ne.s32.totalorder %s147, %s163
      %p165 = scmp.eq.s32.totalorder %s41, 0
      %p166 = por %p164, %p165
      %s168 = sadd.s32 %s167, 1
      %p171 = scmp.eq.s32.totalorder %s35, 3
      %p172 = scmp.ne.s32.totalorder %s167, %s169
      %p173 = scmp.eq.s32.totalorder %s35, 0
      %p174 = por %p172, %p173
      %p175 = scmp.ne.s32.totalorder %s167, %s169
      %p176 = scmp.eq.s32.totalorder %s40, 3
      %p177 = por %p175, %p176
      %p178 = scmp.ne.s32.totalorder %s169, %s170
      %p179 = scmp.eq.s32.totalorder %s40, 0
      %p180 = por %p178, %p179
      %p181 = scmp.ne.s32.totalorder %s169, %s170
      %p182 = scmp.eq.s32.totalorder %s41, 3
      %p183 = por %p181, %p182
      %p185 = scmp.ne.s32.totalorder %s170, %s184
      %p186 = scmp.eq.s32.totalorder %s41, 0
      %p187 = por %p185, %p186
      %s189 = sadd.s32 %s188, 1
      %p192 = scmp.eq.s32.totalorder %s35, 3
      %p193 = scmp.ne.s32.totalorder %s188, %s190
      %p194 = scmp.eq.s32.totalorder %s35, 0
      %p195 = por %p193, %p194
      %p196 = scmp.ne.s32.totalorder %s188, %s190
      %p197 = scmp.eq.s32.totalorder %s40, 3
      %p198 = por %p196, %p197
      %p199 = scmp.ne.s32.totalorder %s190, %s191
      %p200 = scmp.eq.s32.totalorder %s40, 0
      %p201 = por %p199, %p200
      %p202 = scmp.ne.s32.totalorder %s190, %s191
      %p203 = scmp.eq.s32.totalorder %s41, 3
      %p204 = por %p202, %p203
      %p206 = scmp.ne.s32.totalorder %s191, %s205
      %p207 = scmp.eq.s32.totalorder %s41, 0
      %p208 = por %p206, %p207
      %s209 = ssub.s32 %s42, %s54
      %p210 = scmp.eq.s32.totalorder %s209, 0
      %s212 = sadd.s32 %s211, 1
      %s213 = scalar_select %p210, %s211, %s212
      %p216 = pneg %p210
      %p217 = scmp.eq.s32.totalorder %s35, 3
      %p218 = por %p216, %p217
      %p219 = scmp.ne.s32.totalorder %s211, %s214
      %p220 = scmp.eq.s32.totalorder %s35, 0
      %p221 = por %p219, %p220
      %p222 = scmp.ne.s32.totalorder %s211, %s214
      %p223 = scmp.eq.s32.totalorder %s40, 3
      %p224 = por %p222, %p223
      %p225 = scmp.ne.s32.totalorder %s214, %s215
      %p226 = scmp.eq.s32.totalorder %s40, 0
      %p227 = por %p225, %p226
      %p228 = scmp.ne.s32.totalorder %s214, %s215
      %p229 = scmp.eq.s32.totalorder %s41, 3
      %p230 = por %p228, %p229
      %p232 = scmp.ne.s32.totalorder %s215, %s231
      %p233 = scmp.eq.s32.totalorder %s41, 0
      %p234 = por %p232, %p233
      %s236 = sadd.s32 %s235, 1
      %p239 = scmp.eq.s32.totalorder %s35, 3
      %p240 = scmp.ne.s32.totalorder %s235, %s237
      %p241 = scmp.eq.s32.totalorder %s35, 0
      %p242 = por %p240, %p241
      %p243 = scmp.ne.s32.totalorder %s235, %s237
      %p244 = scmp.eq.s32.totalorder %s40, 3
      %p245 = por %p243, %p244
      %p246 = scmp.ne.s32.totalorder %s237, %s238
      %p247 = scmp.eq.s32.totalorder %s40, 0
      %p248 = por %p246, %p247
      %p249 = scmp.ne.s32.totalorder %s237, %s238
      %p250 = scmp.eq.s32.totalorder %s41, 3
      %p251 = por %p249, %p250
      %p253 = scmp.ne.s32.totalorder %s238, %s252
      %p254 = scmp.eq.s32.totalorder %s41, 0
      %p255 = por %p253, %p254
      %s256 = ssub.s32 %s42, %s54
      %p257 = scmp.eq.s32.totalorder %s256, 0
      %s259 = sadd.s32 %s258, 1
      %s260 = scalar_select %p257, %s258, %s259
      %p263 = pneg %p257
      %p264 = scmp.eq.s32.totalorder %s35, 3
      %p265 = por %p263, %p264
      %p266 = scmp.ne.s32.totalorder %s258, %s261
      %p267 = scmp.eq.s32.totalorder %s35, 0
      %p268 = por %p266, %p267
      %p269 = scmp.ne.s32.totalorder %s258, %s261
      %p270 = scmp.eq.s32.totalorder %s40, 3
      %p271 = por %p269, %p270
      %p272 = scmp.ne.s32.totalorder %s261, %s262
      %p273 = scmp.eq.s32.totalorder %s40, 0
      %p274 = por %p272, %p273
      %p275 = scmp.ne.s32.totalorder %s261, %s262
      %p276 = scmp.eq.s32.totalorder %s41, 3
      %p277 = por %p275, %p276
      %p279 = scmp.ne.s32.totalorder %s262, %s278
      %p280 = scmp.eq.s32.totalorder %s41, 0
      %p281 = por %p279, %p280
      %p282 = scmp.le.s32.totalorder 1, %s35
      %p283 = scmp.lt.s32.totalorder %s35, 5
      %p284 = pnand %p282, %p283
      %p285 = pneg %p284
      // Predicated region
      $region9: #{tpu_custom_call.1} parent=5 // pred_check
        _
      $region10: #{tpu_custom_call.1} parent=5 // pred_check_branch
        %287 = sbr.rel (%p284) target = $region12
      $region11: #{tpu_custom_call.1} parent=5 // pred_region
        %s288 = ssub.s32 %s35, 1
        // Predicated region
        $region13: #{tpu_custom_call.1} parent=11 // pred_check
          %p289 = pneg %p180
        $region14: #{tpu_custom_call.1} parent=11 // pred_check_branch
          %291 = sbr.rel (%p289) target = $region16
        $region15: #{tpu_custom_call.1} parent=11 // pred_region
          %293 = vsyncadd [#allocation11], 0
          %s294 = sshll.u32 %s5, 4
          %s295 = int_to_ptr.hbm [resolvable:$true] %s294
          %s296 = sshll.u32 [#allocation10], 4
          %s297 = int_to_ptr.vmem [resolvable:$true] %s296
          %302 = dma.hbm_to_vmem [thread:$0]  %s295, 2048, %s297, [#allocation11], 128, 128, 8
        $region16: #{tpu_custom_call.1} parent=11 // pred_fallthru
          _
        // Predicated region
        $region17: #{tpu_custom_call.1} parent=11 // pred_check
          %p303 = pneg %p201
        $region18: #{tpu_custom_call.1} parent=11 // pred_check_branch
          %305 = sbr.rel (%p303) target = $region20
        $region19: #{tpu_custom_call.1} parent=11 // pred_region
          _
        $region20: #{tpu_custom_call.1} parent=11 // pred_fallthru
          _
        // Predicated region
        $region21: #{tpu_custom_call.1} parent=11 // pred_check
          %p306 = pneg %p248
        $region22: #{tpu_custom_call.1} parent=11 // pred_check_branch
          %308 = sbr.rel (%p306) target = $region24
        $region23: #{tpu_custom_call.1} parent=11 // pred_region
          %310 = vsyncadd [#allocation11], 0
          %s311 = sshll.u32 %s8, 4
          %s312 = int_to_ptr.hbm [resolvable:$true] %s311
          %s313 = sshll.u32 [#allocation13], 4
          %s314 = int_to_ptr.vmem [resolvable:$true] %s313
          %319 = dma.hbm_to_vmem [thread:$0]  %s312, 1024, %s314, [#allocation11], 64, 64, 4
        $region24: #{tpu_custom_call.1} parent=11 // pred_fallthru
          _
      $region12: #{tpu_custom_call.1} parent=5 // pred_fallthru
        _
      %p320 = scmp.lt.s32.totalorder %s35, 4
      // Predicated region
      $region25: #{tpu_custom_call.1} parent=5 // pred_check
        %p321 = pneg %p320
      $region26: #{tpu_custom_call.1} parent=5 // pred_check_branch
        %323 = sbr.rel (%p321) target = $region28
      $region27: #{tpu_custom_call.1} parent=5 // pred_region
        // Predicated region
        $region29: #{tpu_custom_call.1} parent=27 // pred_check
          %p324 = pneg %p85
        $region30: #{tpu_custom_call.1} parent=27 // pred_check_branch
          %326 = sbr.rel (%p324) target = $region32
        $region31: #{tpu_custom_call.1} parent=27 // pred_region
          %s327 = sand.u32 %s75, 1
          %s328 = sand.u32 %s75, 1
          %s329 = smul.addr %s328, 64
          %s330 = scalar_lea.vmem [#allocation6], %s329
          %s331 = sshra.s32 %s43, 7
          %s332 = sand.u32 %s43, 127
          %s333 = sadd.s32 %s331, %s42
          %s334 = smul.u32 %s333, 128
          %s335 = sshra.s32 %s43, 7
          %s336 = sand.u32 %s43, 127
          %s337 = sadd.s32 %s334, %s336
          %s338 = sld [smem:[#allocation4 + %s337]]
          %s339 = smul.u32 16, %s42
          %s340 = smul.addr %s339, 2
          %s341 = sadd.s32 %s338, %s340
          %s342 = smul.addr %s341, 4
          %s343 = scalar_lea.vmem %s2, %s342
          // Predicated region
          $region33: #{tpu_custom_call.1} parent=31 // pred_check
            _
          $region34: #{tpu_custom_call.1} parent=31 // pred_check_branch
            %345 = sbr.rel (0) target = $region36
          $region35: #{tpu_custom_call.1} parent=31 // pred_region
            // Predicated region
            $region37: #{tpu_custom_call.1} parent=35 // pred_check
              _
            $region38: #{tpu_custom_call.1} parent=35 // pred_check_branch
              %347 = sbr.rel target = $region40
            $region39: #{tpu_custom_call.1} parent=35 // pred_region
              // Predicated region
              $region52: #{tpu_custom_call.1} parent=39 // pred_check
                _
              $region53: #{tpu_custom_call.1} parent=39 // pred_check_branch
                %393 = sbr.rel (0) target = $region55
              $region54: #{tpu_custom_call.1} parent=39 // pred_region
                loop: start=0, step=1, limit=1
                $region56: #{tpu_custom_call.1} parent=54 // loop_pre_header
                  _
                $region57: #{tpu_custom_call.1} parent=54 // loop_header
                  %s395 = sphi 0, %s399
                  %p396 = scmp.ge.s32.totalorder %s395, 1
                  %s400 = sphi %s343, %s343
                  %s401 = sphi %s330, %s330
                $region58: #{tpu_custom_call.1} parent=54 // loop_header_branch
                  %398 = sbr.rel (%p396) target = $region62
                $region59: #{tpu_custom_call.1} parent=54 // loop_body
                  _
                $region60: #{tpu_custom_call.1} parent=54 // loop_footer
                  %s399 = sadd.s32 1, %s395
                $region61: #{tpu_custom_call.1} parent=54 // loop_footer_branch
                  %394 = sbr.rel target = $region57
                $region62: #{tpu_custom_call.1} parent=54 // loop_exit
                  _
                %s403 = ssub.s32 16, 1
                loop: start=0, step=1, limit=1
                $region63: #{tpu_custom_call.1} parent=54 // loop_pre_header
                  _
                $region64: #{tpu_custom_call.1} parent=54 // loop_header
                  %s405 = sphi 0, %s409
                  %p406 = scmp.ge.s32.totalorder %s405, 1
                  %s410 = sphi %s343, %s343
                  %s411 = sphi %s330, %s330
                $region65: #{tpu_custom_call.1} parent=54 // loop_header_branch
                  %408 = sbr.rel (%p406) target = $region69
                $region66: #{tpu_custom_call.1} parent=54 // loop_body
                  %v412 = vld [vmem:[%s410] sm:%s403]
                  %413 = vst [vmem:[%s411] sm:%s403] %v412
                  %v414 = vld [vmem:[%s410 + $0x8] sm:%s403]
                  %415 = vst [vmem:[%s411 + $0x4] sm:%s403] %v414
                  %v416 = vld [vmem:[%s410 + $0x10] sm:%s403]
                  %417 = vst [vmem:[%s411 + $0x8] sm:%s403] %v416
                  %v418 = vld [vmem:[%s410 + $0x18] sm:%s403]
                  %419 = vst [vmem:[%s411 + $0xc] sm:%s403] %v418
                  %v420 = vld [vmem:[%s410 + $0x20] sm:%s403]
                  %421 = vst [vmem:[%s411 + $0x10] sm:%s403] %v420
                  %v422 = vld [vmem:[%s410 + $0x28] sm:%s403]
                  %423 = vst [vmem:[%s411 + $0x14] sm:%s403] %v422
                  %v424 = vld [vmem:[%s410 + $0x30] sm:%s403]
                  %425 = vst [vmem:[%s411 + $0x18] sm:%s403] %v424
                  %v426 = vld [vmem:[%s410 + $0x38] sm:%s403]
                  %427 = vst [vmem:[%s411 + $0x1c] sm:%s403] %v426
                  %v428 = vld [vmem:[%s410 + $0x40] sm:%s403]
                  %429 = vst [vmem:[%s411 + $0x20] sm:%s403] %v428
                  %v430 = vld [vmem:[%s410 + $0x48] sm:%s403]
                  %431 = vst [vmem:[%s411 + $0x24] sm:%s403] %v430
                  %v432 = vld [vmem:[%s410 + $0x50] sm:%s403]
                  %433 = vst [vmem:[%s411 + $0x28] sm:%s403] %v432
                  %v434 = vld [vmem:[%s410 + $0x58] sm:%s403]
                  %435 = vst [vmem:[%s411 + $0x2c] sm:%s403] %v434
                  %v436 = vld [vmem:[%s410 + $0x60] sm:%s403]
                  %437 = vst [vmem:[%s411 + $0x30] sm:%s403] %v436
                  %v438 = vld [vmem:[%s410 + $0x68] sm:%s403]
                  %439 = vst [vmem:[%s411 + $0x34] sm:%s403] %v438
                  %v440 = vld [vmem:[%s410 + $0x70] sm:%s403]
                  %441 = vst [vmem:[%s411 + $0x38] sm:%s403] %v440
                  %v442 = vld [vmem:[%s410 + $0x78] sm:%s403]
                  %443 = vst [vmem:[%s411 + $0x3c] sm:%s403] %v442
                $region67: #{tpu_custom_call.1} parent=54 // loop_footer
                  %s409 = sadd.s32 1, %s405
                $region68: #{tpu_custom_call.1} parent=54 // loop_footer_branch
                  %404 = sbr.rel target = $region64
                $region69: #{tpu_custom_call.1} parent=54 // loop_exit
                  _
              $region55: #{tpu_custom_call.1} parent=39 // pred_fallthru
                _
            $region40: #{tpu_custom_call.1} parent=35 // pred_fallthru
              _
            // Predicated region
            $region41: #{tpu_custom_call.1} parent=35 // pred_check
              _
            $region42: #{tpu_custom_call.1} parent=35 // pred_check_branch
              %349 = sbr.rel (0) target = $region44
            $region43: #{tpu_custom_call.1} parent=35 // pred_region
              %s351 = ssub.s32 16, 1
              loop: start=0, step=1, limit=1
              $region45: #{tpu_custom_call.1} parent=43 // loop_pre_header
                _
              $region46: #{tpu_custom_call.1} parent=43 // loop_header
                %s353 = sphi 0, %s357
                %p354 = scmp.ge.s32.totalorder %s353, 1
                %s358 = sphi %s343, %s343
                %s359 = sphi %s330, %s330
              $region47: #{tpu_custom_call.1} parent=43 // loop_header_branch
                %356 = sbr.rel (%p354) target = $region51
              $region48: #{tpu_custom_call.1} parent=43 // loop_body
                %v360 = vld [vmem:[%s358] sm:%s351]
                %361 = vst [vmem:[%s359] sm:%s351] %v360
                %v362 = vld [vmem:[%s358 + $0x8] sm:%s351]
                %363 = vst [vmem:[%s359 + $0x4] sm:%s351] %v362
                %v364 = vld [vmem:[%s358 + $0x10] sm:%s351]
                %365 = vst [vmem:[%s359 + $0x8] sm:%s351] %v364
                %v366 = vld [vmem:[%s358 + $0x18] sm:%s351]
                %367 = vst [vmem:[%s359 + $0xc] sm:%s351] %v366
                %v368 = vld [vmem:[%s358 + $0x20] sm:%s351]
                %369 = vst [vmem:[%s359 + $0x10] sm:%s351] %v368
                %v370 = vld [vmem:[%s358 + $0x28] sm:%s351]
                %371 = vst [vmem:[%s359 + $0x14] sm:%s351] %v370
                %v372 = vld [vmem:[%s358 + $0x30] sm:%s351]
                %373 = vst [vmem:[%s359 + $0x18] sm:%s351] %v372
                %v374 = vld [vmem:[%s358 + $0x38] sm:%s351]
                %375 = vst [vmem:[%s359 + $0x1c] sm:%s351] %v374
                %v376 = vld [vmem:[%s358 + $0x40] sm:%s351]
                %377 = vst [vmem:[%s359 + $0x20] sm:%s351] %v376
                %v378 = vld [vmem:[%s358 + $0x48] sm:%s351]
                %379 = vst [vmem:[%s359 + $0x24] sm:%s351] %v378
                %v380 = vld [vmem:[%s358 + $0x50] sm:%s351]
                %381 = vst [vmem:[%s359 + $0x28] sm:%s351] %v380
                %v382 = vld [vmem:[%s358 + $0x58] sm:%s351]
                %383 = vst [vmem:[%s359 + $0x2c] sm:%s351] %v382
                %v384 = vld [vmem:[%s358 + $0x60] sm:%s351]
                %385 = vst [vmem:[%s359 + $0x30] sm:%s351] %v384
                %v386 = vld [vmem:[%s358 + $0x68] sm:%s351]
                %387 = vst [vmem:[%s359 + $0x34] sm:%s351] %v386
                %v388 = vld [vmem:[%s358 + $0x70] sm:%s351]
                %389 = vst [vmem:[%s359 + $0x38] sm:%s351] %v388
                %v390 = vld [vmem:[%s358 + $0x78] sm:%s351]
                %391 = vst [vmem:[%s359 + $0x3c] sm:%s351] %v390
              $region49: #{tpu_custom_call.1} parent=43 // loop_footer
                %s357 = sadd.s32 1, %s353
              $region50: #{tpu_custom_call.1} parent=43 // loop_footer_branch
                %352 = sbr.rel target = $region46
              $region51: #{tpu_custom_call.1} parent=43 // loop_exit
                _
            $region44: #{tpu_custom_call.1} parent=35 // pred_fallthru
              _
          $region36: #{tpu_custom_call.1} parent=31 // pred_fallthru
            _
          %444 = vnop
        $region32: #{tpu_custom_call.1} parent=27 // pred_fallthru
          _
        // Predicated region
        $region70: #{tpu_custom_call.1} parent=27 // pred_check
          %p445 = pneg %p127
        $region71: #{tpu_custom_call.1} parent=27 // pred_check_branch
          %447 = sbr.rel (%p445) target = $region73
        $region72: #{tpu_custom_call.1} parent=27 // pred_region
          %s448 = sand.u32 %s35, 1
          %s449 = scalar_lea.sflag [#allocation8], %s448
          %s450 = sand.u32 %s117, 1
          %s451 = smul.addr %s450, 64
          %s452 = scalar_lea.vmem [#allocation7], %s451
          %s453 = sshra.s32 %s43, 7
          %s454 = sand.u32 %s43, 127
          %s455 = sadd.s32 %s453, %s42
          %s456 = smul.u32 %s455, 128
          %s457 = sshra.s32 %s43, 7
          %s458 = sand.u32 %s43, 127
          %s459 = sadd.s32 %s456, %s458
          %s460 = sld [smem:[#allocation4 + %s459]]
          %s461 = smul.u32 16, %s460
          %463 = vsyncadd %s449, 0
          %s464 = smul.addr %s461, 4
          %s465 = scalar_lea.hbm %s3, %s464
          %s466 = sshll.u32 %s465, 4
          %s467 = int_to_ptr.hbm [resolvable:$true] %s466
          %s468 = sshll.u32 %s452, 4
          %s469 = int_to_ptr.vmem [resolvable:$true] %s468
          %474 = dma.hbm_to_vmem [thread:$0]  %s467, 1024, %s469, %s449, 64, 64, 4
        $region73: #{tpu_custom_call.1} parent=27 // pred_fallthru
          _
        // Predicated region
        $region74: #{tpu_custom_call.1} parent=27 // pred_check
          %p475 = pneg %p153
        $region75: #{tpu_custom_call.1} parent=27 // pred_check_branch
          %477 = sbr.rel (%p475) target = $region77
        $region76: #{tpu_custom_call.1} parent=27 // pred_region
          %s478 = smul.u32 16, %s42
          %p479 = scmp.lt.s32.totalorder %s478, 31
          %s480 = scalar_select %p479, %s478, 31
          %s481 = smul.addr %s480, 8
          %s482 = scalar_lea.vmem %s4, %s481
          %s483 = smul.u32 16, %s42
        $region77: #{tpu_custom_call.1} parent=27 // pred_fallthru
          _
        // Predicated region
        $region78: #{tpu_custom_call.1} parent=27 // pred_check
          %p484 = pneg %p221
        $region79: #{tpu_custom_call.1} parent=27 // pred_check_branch
          %486 = sbr.rel (%p484) target = $region81
        $region80: #{tpu_custom_call.1} parent=27 // pred_region
          %s487 = sand.u32 %s35, 1
          %s488 = scalar_lea.sflag [#allocation8], %s487
          %s489 = sand.u32 %s211, 1
          %s490 = smul.addr %s489, 64
          %s491 = scalar_lea.vmem [#allocation12], %s490
          %s492 = smul.u32 16, %s42
          %494 = vsyncadd %s488, 0
          %s495 = smul.addr %s492, 4
          %s496 = scalar_lea.hbm %s7, %s495
          %s497 = sshll.u32 %s496, 4
          %s498 = int_to_ptr.hbm [resolvable:$true] %s497
          %s499 = sshll.u32 %s491, 4
          %s500 = int_to_ptr.vmem [resolvable:$true] %s499
          %505 = dma.hbm_to_vmem [thread:$0]  %s498, 1024, %s500, %s488, 64, 64, 4
        $region81: #{tpu_custom_call.1} parent=27 // pred_fallthru
          _
      $region28: #{tpu_custom_call.1} parent=5 // pred_fallthru
        _
      %p506 = scmp.le.s32.totalorder 1, %s35
      %p507 = scmp.lt.s32.totalorder %s35, 5
      %p508 = pnand %p506, %p507
      %p509 = pneg %p508
      // Predicated region
      $region82: #{tpu_custom_call.1} parent=5 // pred_check
        _
      $region83: #{tpu_custom_call.1} parent=5 // pred_check_branch
        %511 = sbr.rel (%p508) target = $region85
      $region84: #{tpu_custom_call.1} parent=5 // pred_region
        %s512 = ssub.s32 %s35, 1
        %s513 = sand.u32 %s78, 1
        %s514 = sand.u32 %s78, 1
        %s515 = smul.addr %s514, 64
        %s516 = scalar_lea.vmem [#allocation6], %s515
        // Predicated region
        $region86: #{tpu_custom_call.1} parent=84 // pred_check
          %p517 = pneg %p91
        $region87: #{tpu_custom_call.1} parent=84 // pred_check_branch
          %519 = sbr.rel (%p517) target = $region89
        $region88: #{tpu_custom_call.1} parent=84 // pred_region
          _
        $region89: #{tpu_custom_call.1} parent=84 // pred_fallthru
          _
        %s520 = sand.u32 %s40, 1
        %s521 = scalar_lea.sflag [#allocation8], %s520
        %s522 = sand.u32 %s120, 1
        %s523 = smul.addr %s522, 64
        %s524 = scalar_lea.vmem [#allocation7], %s523
        // Predicated region
        $region90: #{tpu_custom_call.1} parent=84 // pred_check
          %p525 = pneg %p133
        $region91: #{tpu_custom_call.1} parent=84 // pred_check_branch
          %527 = sbr.rel (%p525) target = $region93
        $region92: #{tpu_custom_call.1} parent=84 // pred_region
          %529 = dma.done %s521, 1024
        $region93: #{tpu_custom_call.1} parent=84 // pred_fallthru
          _
        // Predicated region
        $region94: #{tpu_custom_call.1} parent=84 // pred_check
          %p530 = pneg %p180
        $region95: #{tpu_custom_call.1} parent=84 // pred_check_branch
          %532 = sbr.rel (%p530) target = $region97
        $region96: #{tpu_custom_call.1} parent=84 // pred_region
          %534 = dma.done [#allocation11], 2048
        $region97: #{tpu_custom_call.1} parent=84 // pred_fallthru
          _
        %s535 = sand.u32 %s40, 1
        %s536 = scalar_lea.sflag [#allocation8], %s535
        %s537 = sand.u32 %s214, 1
        %s538 = smul.addr %s537, 64
        %s539 = scalar_lea.vmem [#allocation12], %s538
        // Predicated region
        $region98: #{tpu_custom_call.1} parent=84 // pred_check
          %p540 = pneg %p227
        $region99: #{tpu_custom_call.1} parent=84 // pred_check_branch
          %542 = sbr.rel (%p540) target = $region101
        $region100: #{tpu_custom_call.1} parent=84 // pred_region
          %544 = dma.done %s536, 1024
        $region101: #{tpu_custom_call.1} parent=84 // pred_fallthru
          _
        // Predicated region
        $region102: #{tpu_custom_call.1} parent=84 // pred_check
          %p545 = pneg %p248
        $region103: #{tpu_custom_call.1} parent=84 // pred_check_branch
          %547 = sbr.rel (%p545) target = $region105
        $region104: #{tpu_custom_call.1} parent=84 // pred_region
          %549 = dma.done [#allocation11], 1024
        $region105: #{tpu_custom_call.1} parent=84 // pred_fallthru
          _
        %s550 = sand.u32 %s78, 1
        %s551 = sand.u32 %s78, 1
        %s552 = smul.addr %s551, 64
        %s553 = scalar_lea.vmem [#allocation6], %s552
        %p554 = pneg %p91
        %p555 = pneg %p88
        %s556 = sand.u32 %s40, 1
        %s557 = scalar_lea.sflag [#allocation8], %s556
        %s558 = sand.u32 %s120, 1
        %s559 = smul.addr %s558, 64
        %s560 = scalar_lea.vmem [#allocation7], %s559
        %p561 = pneg %p133
        %p562 = pneg %p130
        %s563 = smul.u32 16, %s44
        %p564 = scmp.lt.s32.totalorder %s563, 31
        %s565 = scalar_select %p564, %s563, 31
        %s566 = smul.addr %s565, 8
        %s567 = scalar_lea.vmem %s4, %s566
        %p568 = pneg %p159
        %p569 = pneg %p156
        %p570 = pneg %p180
        %p571 = pneg %p177
        %p572 = pneg %p201
        %p573 = pneg %p198
        %s574 = sand.u32 %s40, 1
        %s575 = scalar_lea.sflag [#allocation8], %s574
        %s576 = sand.u32 %s214, 1
        %s577 = smul.addr %s576, 64
        %s578 = scalar_lea.vmem [#allocation12], %s577
        %p579 = pneg %p227
        %p580 = pneg %p224
        %p581 = pneg %p248
        %p582 = pneg %p245
        %p583 = pneg %p274
        %p584 = pneg %p271
        %s585 = sand.u32 %s261, 1
        %s586 = scalar_lea.sflag [#allocation9], %s585
        %s587 = sand.u32 %s261, 1
        %s588 = smul.addr %s587, 64
        %s589 = scalar_lea.vmem [#allocation14], %s588
        %s590 = sshra.s32 %s45, 7
        %s591 = sand.u32 %s45, 127
        %s592 = sadd.s32 %s590, %s44
        %s593 = smul.u32 %s592, 128
        %s594 = sshra.s32 %s45, 7
        %s595 = sand.u32 %s45, 127
        %s596 = sadd.s32 %s593, %s595
        %s597 = sld [smem:[#allocation4 + %s596]]
        %s598 = smul.u32 16, %s44
        %s599 = sshra.s32 %s45, 7
        %s600 = sand.u32 %s45, 127
        %s601 = sadd.s32 %s599, %s44
        %s602 = smul.u32 %s601, 128
        %s603 = sshra.s32 %s45, 7
        %s604 = sand.u32 %s45, 127
        %s605 = sadd.s32 %s602, %s604
        %s606 = sld [smem:[#allocation4 + %s605]]
        %s607 = smul.u32 16, %s606
        %s608 = smul.u32 16, %s44
        %p609 = scmp.lt.s32.totalorder %s608, 31
        %s610 = scalar_select %p609, %s608, 31
        %s611 = smul.addr %s610, 8
        %s612 = scalar_lea.vmem %s4, %s611
        %s613 = smul.u32 16, %s44
        %s614 = smul.u32 16, %s44
        %s615 = smul.u32 16, %s44
        %s616 = sld [smem:[#allocation5 + %s44]]
        %p617 = scmp.eq.s32.totalorder %s45, 0
        // Predicated region
        $region106: #{tpu_custom_call.1} parent=84 // pred_check
          %p618 = pneg %p617
        $region107: #{tpu_custom_call.1} parent=84 // pred_check_branch
          %620 = sbr.rel (%p618) target = $region109
        $region108: #{tpu_custom_call.1} parent=84 // pred_region
          %v621 = vld [vmem:[%s516] sm:$0xf]
          %v622 = vld [vmem:[%s516 + $0x4] sm:$0xf]
          %v623 = vld [vmem:[%s516 + $0x8] sm:$0xf]
          %v624 = vld [vmem:[%s516 + $0xc] sm:$0xf]
          %v625 = vld [vmem:[%s516 + $0x10] sm:$0xf]
          %v626 = vld [vmem:[%s516 + $0x14] sm:$0xf]
          %v627 = vld [vmem:[%s516 + $0x18] sm:$0xf]
          %v628 = vld [vmem:[%s516 + $0x1c] sm:$0xf]
          %v629 = vld [vmem:[%s516 + $0x20] sm:$0xf]
          %v630 = vld [vmem:[%s516 + $0x24] sm:$0xf]
          %v631 = vld [vmem:[%s516 + $0x28] sm:$0xf]
          %v632 = vld [vmem:[%s516 + $0x2c] sm:$0xf]
          %v633 = vld [vmem:[%s516 + $0x30] sm:$0xf]
          %v634 = vld [vmem:[%s516 + $0x34] sm:$0xf]
          %v635 = vld [vmem:[%s516 + $0x38] sm:$0xf]
          %v636 = vld [vmem:[%s516 + $0x3c] sm:$0xf]
          %v637 = vld [vmem:[%s524] sm:$0xf]
          %v638 = vld [vmem:[%s524 + $0x4] sm:$0xf]
          %v639 = vld [vmem:[%s524 + $0x8] sm:$0xf]
          %v640 = vld [vmem:[%s524 + $0xc] sm:$0xf]
          %v641 = vld [vmem:[%s524 + $0x10] sm:$0xf]
          %v642 = vld [vmem:[%s524 + $0x14] sm:$0xf]
          %v643 = vld [vmem:[%s524 + $0x18] sm:$0xf]
          %v644 = vld [vmem:[%s524 + $0x1c] sm:$0xf]
          %v645 = vld [vmem:[%s524 + $0x20] sm:$0xf]
          %v646 = vld [vmem:[%s524 + $0x24] sm:$0xf]
          %v647 = vld [vmem:[%s524 + $0x28] sm:$0xf]
          %v648 = vld [vmem:[%s524 + $0x2c] sm:$0xf]
          %v649 = vld [vmem:[%s524 + $0x30] sm:$0xf]
          %v650 = vld [vmem:[%s524 + $0x34] sm:$0xf]
          %v651 = vld [vmem:[%s524 + $0x38] sm:$0xf]
          %v652 = vld [vmem:[%s524 + $0x3c] sm:$0xf]
          %v669 = vunpack.c.l.b16 %v621
          %v670 = vunpack.c.l.b16 %v622
          %v671 = vunpack.c.l.b16 %v623
          %v672 = vunpack.c.l.b16 %v624
          %v673 = vunpack.c.l.b16 %v625
          %v674 = vunpack.c.l.b16 %v626
          %v675 = vunpack.c.l.b16 %v627
          %v676 = vunpack.c.l.b16 %v628
          %v677 = vunpack.c.l.b16 %v629
          %v678 = vunpack.c.l.b16 %v630
          %v679 = vunpack.c.l.b16 %v631
          %v680 = vunpack.c.l.b16 %v632
          %v681 = vunpack.c.l.b16 %v633
          %v682 = vunpack.c.l.b16 %v634
          %v683 = vunpack.c.l.b16 %v635
          %v684 = vunpack.c.l.b16 %v636
          %v685 = vpack.c.b16 %v670, %v669
          %v686 = vpack.c.b16 %v672, %v671
          %v687 = vpack.c.b16 %v674, %v673
          %v688 = vpack.c.b16 %v676, %v675
          %v689 = vpack.c.b16 %v678, %v677
          %v690 = vpack.c.b16 %v680, %v679
          %v691 = vpack.c.b16 %v682, %v681
          %v692 = vpack.c.b16 %v684, %v683
          %v717 = vunpack.c.l.b16 %v637
          %v718 = vunpack.c.l.b16 %v638
          %v719 = vunpack.c.l.b16 %v639
          %v720 = vunpack.c.l.b16 %v640
          %v721 = vunpack.c.l.b16 %v641
          %v722 = vunpack.c.l.b16 %v642
          %v723 = vunpack.c.l.b16 %v643
          %v724 = vunpack.c.l.b16 %v644
          %v725 = vunpack.c.l.b16 %v645
          %v726 = vunpack.c.l.b16 %v646
          %v727 = vunpack.c.l.b16 %v647
          %v728 = vunpack.c.l.b16 %v648
          %v729 = vunpack.c.l.b16 %v649
          %v730 = vunpack.c.l.b16 %v650
          %v731 = vunpack.c.l.b16 %v651
          %v732 = vunpack.c.l.b16 %v652
          %v733 = vpack.c.b16 %v718, %v717
          %v734 = vpack.c.b16 %v720, %v719
          %v735 = vpack.c.b16 %v722, %v721
          %v736 = vpack.c.b16 %v724, %v723
          %v737 = vpack.c.b16 %v726, %v725
          %v738 = vpack.c.b16 %v728, %v727
          %v739 = vpack.c.b16 %v730, %v729
          %v740 = vpack.c.b16 %v732, %v731
          %749 = vmatpush.bf16.msra.mxu0 %v740
          %750 = vmatpush.bf16.msra.mxu0 %v739
          %751 = vmatpush.bf16.msra.mxu0 %v738
          %752 = vmatpush.bf16.msra.mxu0 %v737
          %753 = vmatpush.bf16.msra.mxu0 %v736
          %754 = vmatpush.bf16.msra.mxu0 %v735
          %755 = vmatpush.bf16.msra.mxu0 %v734
          %756 = vmatpush.bf16.msra.mxu0 %v733
          %757 = vmatmul.bf16.gmra.mxu0 %v685
          %v758 = vpop.f32.mrf.mxu0
          %v759 = vadd.f32 0.0, %v758
          %v760 = vpop.f32.mrf.mxu0
          %v761 = vadd.f32 0.0, %v760
          %762 = vmatmul.bf16.gmra.mxu0 %v686
          %v763 = vpop.f32.mrf.mxu0
          %v764 = vadd.f32 0.0, %v763
          %v765 = vpop.f32.mrf.mxu0
          %v766 = vadd.f32 0.0, %v765
          %767 = vmatmul.bf16.gmra.mxu0 %v687
          %v768 = vpop.f32.mrf.mxu0
          %v769 = vadd.f32 0.0, %v768
          %v770 = vpop.f32.mrf.mxu0
          %v771 = vadd.f32 0.0, %v770
          %772 = vmatmul.bf16.gmra.mxu0 %v688
          %v773 = vpop.f32.mrf.mxu0
          %v774 = vadd.f32 0.0, %v773
          %v775 = vpop.f32.mrf.mxu0
          %v776 = vadd.f32 0.0, %v775
          %777 = vmatmul.bf16.gmra.mxu0 %v689
          %v778 = vpop.f32.mrf.mxu0
          %v779 = vadd.f32 0.0, %v778
          %v780 = vpop.f32.mrf.mxu0
          %v781 = vadd.f32 0.0, %v780
          %782 = vmatmul.bf16.gmra.mxu0 %v690
          %v783 = vpop.f32.mrf.mxu0
          %v784 = vadd.f32 0.0, %v783
          %v785 = vpop.f32.mrf.mxu0
          %v786 = vadd.f32 0.0, %v785
          %787 = vmatmul.bf16.gmra.mxu0 %v691
          %v788 = vpop.f32.mrf.mxu0
          %v789 = vadd.f32 0.0, %v788
          %v790 = vpop.f32.mrf.mxu0
          %v791 = vadd.f32 0.0, %v790
          %792 = vmatmul.bf16.gmra.mxu0 %v692
          %v793 = vpop.f32.mrf.mxu0
          %v794 = vadd.f32 0.0, %v793
          %v795 = vpop.f32.mrf.mxu0
          %v796 = vadd.f32 0.0, %v795
          %797 = vdwg.mxu0
          %798 = vst [vmem:[#allocation2] sm:$0xff] %v759
          %799 = vst [vmem:[#allocation2 + $0x8] sm:$0xff] %v761
          %800 = vst [vmem:[#allocation2 + $0x10] sm:$0xff] %v764
          %801 = vst [vmem:[#allocation2 + $0x18] sm:$0xff] %v766
          %802 = vst [vmem:[#allocation2 + $0x20] sm:$0xff] %v769
          %803 = vst [vmem:[#allocation2 + $0x28] sm:$0xff] %v771
          %804 = vst [vmem:[#allocation2 + $0x30] sm:$0xff] %v774
          %805 = vst [vmem:[#allocation2 + $0x38] sm:$0xff] %v776
          %806 = vst [vmem:[#allocation2 + $0x40] sm:$0xff] %v779
          %807 = vst [vmem:[#allocation2 + $0x48] sm:$0xff] %v781
          %808 = vst [vmem:[#allocation2 + $0x50] sm:$0xff] %v784
          %809 = vst [vmem:[#allocation2 + $0x58] sm:$0xff] %v786
          %810 = vst [vmem:[#allocation2 + $0x60] sm:$0xff] %v789
          %811 = vst [vmem:[#allocation2 + $0x68] sm:$0xff] %v791
          %812 = vst [vmem:[#allocation2 + $0x70] sm:$0xff] %v794
          %813 = vst [vmem:[#allocation2 + $0x78] sm:$0xff] %v796
        $region109: #{tpu_custom_call.1} parent=84 // pred_fallthru
          _
        %p814 = scmp.gt.s32.totalorder %s45, 0
        %p815 = scmp.lt.s32.totalorder %s45, %s616
        %p816 = pnand %p814, %p815
        %p817 = pneg %p816
        // Predicated region
        $region110: #{tpu_custom_call.1} parent=84 // pred_check
          _
        $region111: #{tpu_custom_call.1} parent=84 // pred_check_branch
          %819 = sbr.rel (%p816) target = $region113
        $region112: #{tpu_custom_call.1} parent=84 // pred_region
          %v820 = vld [vmem:[#allocation2] sm:$0xff]
          %v821 = vld [vmem:[#allocation2 + $0x8] sm:$0xff]
          %v822 = vld [vmem:[#allocation2 + $0x10] sm:$0xff]
          %v823 = vld [vmem:[#allocation2 + $0x18] sm:$0xff]
          %v824 = vld [vmem:[#allocation2 + $0x20] sm:$0xff]
          %v825 = vld [vmem:[#allocation2 + $0x28] sm:$0xff]
          %v826 = vld [vmem:[#allocation2 + $0x30] sm:$0xff]
          %v827 = vld [vmem:[#allocation2 + $0x38] sm:$0xff]
          %v828 = vld [vmem:[#allocation2 + $0x40] sm:$0xff]
          %v829 = vld [vmem:[#allocation2 + $0x48] sm:$0xff]
          %v830 = vld [vmem:[#allocation2 + $0x50] sm:$0xff]
          %v831 = vld [vmem:[#allocation2 + $0x58] sm:$0xff]
          %v832 = vld [vmem:[#allocation2 + $0x60] sm:$0xff]
          %v833 = vld [vmem:[#allocation2 + $0x68] sm:$0xff]
          %v834 = vld [vmem:[#allocation2 + $0x70] sm:$0xff]
          %v835 = vld [vmem:[#allocation2 + $0x78] sm:$0xff]
          %v836 = vld [vmem:[%s516] sm:$0xf]
          %v837 = vld [vmem:[%s516 + $0x4] sm:$0xf]
          %v838 = vld [vmem:[%s516 + $0x8] sm:$0xf]
          %v839 = vld [vmem:[%s516 + $0xc] sm:$0xf]
          %v840 = vld [vmem:[%s516 + $0x10] sm:$0xf]
          %v841 = vld [vmem:[%s516 + $0x14] sm:$0xf]
          %v842 = vld [vmem:[%s516 + $0x18] sm:$0xf]
          %v843 = vld [vmem:[%s516 + $0x1c] sm:$0xf]
          %v844 = vld [vmem:[%s516 + $0x20] sm:$0xf]
          %v845 = vld [vmem:[%s516 + $0x24] sm:$0xf]
          %v846 = vld [vmem:[%s516 + $0x28] sm:$0xf]
          %v847 = vld [vmem:[%s516 + $0x2c] sm:$0xf]
          %v848 = vld [vmem:[%s516 + $0x30] sm:$0xf]
          %v849 = vld [vmem:[%s516 + $0x34] sm:$0xf]
          %v850 = vld [vmem:[%s516 + $0x38] sm:$0xf]
          %v851 = vld [vmem:[%s516 + $0x3c] sm:$0xf]
          %v852 = vld [vmem:[%s524] sm:$0xf]
          %v853 = vld [vmem:[%s524 + $0x4] sm:$0xf]
          %v854 = vld [vmem:[%s524 + $0x8] sm:$0xf]
          %v855 = vld [vmem:[%s524 + $0xc] sm:$0xf]
          %v856 = vld [vmem:[%s524 + $0x10] sm:$0xf]
          %v857 = vld [vmem:[%s524 + $0x14] sm:$0xf]
          %v858 = vld [vmem:[%s524 + $0x18] sm:$0xf]
          %v859 = vld [vmem:[%s524 + $0x1c] sm:$0xf]
          %v860 = vld [vmem:[%s524 + $0x20] sm:$0xf]
          %v861 = vld [vmem:[%s524 + $0x24] sm:$0xf]
          %v862 = vld [vmem:[%s524 + $0x28] sm:$0xf]
          %v863 = vld [vmem:[%s524 + $0x2c] sm:$0xf]
          %v864 = vld [vmem:[%s524 + $0x30] sm:$0xf]
          %v865 = vld [vmem:[%s524 + $0x34] sm:$0xf]
          %v866 = vld [vmem:[%s524 + $0x38] sm:$0xf]
          %v867 = vld [vmem:[%s524 + $0x3c] sm:$0xf]
          %v884 = vunpack.c.l.b16 %v836
          %v885 = vunpack.c.l.b16 %v837
          %v886 = vunpack.c.l.b16 %v838
          %v887 = vunpack.c.l.b16 %v839
          %v888 = vunpack.c.l.b16 %v840
          %v889 = vunpack.c.l.b16 %v841
          %v890 = vunpack.c.l.b16 %v842
          %v891 = vunpack.c.l.b16 %v843
          %v892 = vunpack.c.l.b16 %v844
          %v893 = vunpack.c.l.b16 %v845
          %v894 = vunpack.c.l.b16 %v846
          %v895 = vunpack.c.l.b16 %v847
          %v896 = vunpack.c.l.b16 %v848
          %v897 = vunpack.c.l.b16 %v849
          %v898 = vunpack.c.l.b16 %v850
          %v899 = vunpack.c.l.b16 %v851
          %v900 = vpack.c.b16 %v885, %v884
          %v901 = vpack.c.b16 %v887, %v886
          %v902 = vpack.c.b16 %v889, %v888
          %v903 = vpack.c.b16 %v891, %v890
          %v904 = vpack.c.b16 %v893, %v892
          %v905 = vpack.c.b16 %v895, %v894
          %v906 = vpack.c.b16 %v897, %v896
          %v907 = vpack.c.b16 %v899, %v898
          %v932 = vunpack.c.l.b16 %v852
          %v933 = vunpack.c.l.b16 %v853
          %v934 = vunpack.c.l.b16 %v854
          %v935 = vunpack.c.l.b16 %v855
          %v936 = vunpack.c.l.b16 %v856
          %v937 = vunpack.c.l.b16 %v857
          %v938 = vunpack.c.l.b16 %v858
          %v939 = vunpack.c.l.b16 %v859
          %v940 = vunpack.c.l.b16 %v860
          %v941 = vunpack.c.l.b16 %v861
          %v942 = vunpack.c.l.b16 %v862
          %v943 = vunpack.c.l.b16 %v863
          %v944 = vunpack.c.l.b16 %v864
          %v945 = vunpack.c.l.b16 %v865
          %v946 = vunpack.c.l.b16 %v866
          %v947 = vunpack.c.l.b16 %v867
          %v948 = vpack.c.b16 %v933, %v932
          %v949 = vpack.c.b16 %v935, %v934
          %v950 = vpack.c.b16 %v937, %v936
          %v951 = vpack.c.b16 %v939, %v938
          %v952 = vpack.c.b16 %v941, %v940
          %v953 = vpack.c.b16 %v943, %v942
          %v954 = vpack.c.b16 %v945, %v944
          %v955 = vpack.c.b16 %v947, %v946
          %964 = vmatpush.bf16.msra.mxu0 %v955
          %965 = vmatpush.bf16.msra.mxu0 %v954
          %966 = vmatpush.bf16.msra.mxu0 %v953
          %967 = vmatpush.bf16.msra.mxu0 %v952
          %968 = vmatpush.bf16.msra.mxu0 %v951
          %969 = vmatpush.bf16.msra.mxu0 %v950
          %970 = vmatpush.bf16.msra.mxu0 %v949
          %971 = vmatpush.bf16.msra.mxu0 %v948
          %972 = vmatmul.bf16.gmra.mxu0 %v900
          %v973 = vpop.f32.mrf.mxu0
          %v974 = vadd.f32 0.0, %v973
          %v975 = vpop.f32.mrf.mxu0
          %v976 = vadd.f32 0.0, %v975
          %977 = vmatmul.bf16.gmra.mxu0 %v901
          %v978 = vpop.f32.mrf.mxu0
          %v979 = vadd.f32 0.0, %v978
          %v980 = vpop.f32.mrf.mxu0
          %v981 = vadd.f32 0.0, %v980
          %982 = vmatmul.bf16.gmra.mxu0 %v902
          %v983 = vpop.f32.mrf.mxu0
          %v984 = vadd.f32 0.0, %v983
          %v985 = vpop.f32.mrf.mxu0
          %v986 = vadd.f32 0.0, %v985
          %987 = vmatmul.bf16.gmra.mxu0 %v903
          %v988 = vpop.f32.mrf.mxu0
          %v989 = vadd.f32 0.0, %v988
          %v990 = vpop.f32.mrf.mxu0
          %v991 = vadd.f32 0.0, %v990
          %992 = vmatmul.bf16.gmra.mxu0 %v904
          %v993 = vpop.f32.mrf.mxu0
          %v994 = vadd.f32 0.0, %v993
          %v995 = vpop.f32.mrf.mxu0
          %v996 = vadd.f32 0.0, %v995
          %997 = vmatmul.bf16.gmra.mxu0 %v905
          %v998 = vpop.f32.mrf.mxu0
          %v999 = vadd.f32 0.0, %v998
          %v1000 = vpop.f32.mrf.mxu0
          %v1001 = vadd.f32 0.0, %v1000
          %1002 = vmatmul.bf16.gmra.mxu0 %v906
          %v1003 = vpop.f32.mrf.mxu0
          %v1004 = vadd.f32 0.0, %v1003
          %v1005 = vpop.f32.mrf.mxu0
          %v1006 = vadd.f32 0.0, %v1005
          %1007 = vmatmul.bf16.gmra.mxu0 %v907
          %v1008 = vpop.f32.mrf.mxu0
          %v1009 = vadd.f32 0.0, %v1008
          %v1010 = vpop.f32.mrf.mxu0
          %v1011 = vadd.f32 0.0, %v1010
          %1012 = vdwg.mxu0
          %v1013 = vadd.f32 %v820, %v974
          %v1014 = vadd.f32 %v821, %v976
          %v1015 = vadd.f32 %v822, %v979
          %v1016 = vadd.f32 %v823, %v981
          %v1017 = vadd.f32 %v824, %v984
          %v1018 = vadd.f32 %v825, %v986
          %v1019 = vadd.f32 %v826, %v989
          %v1020 = vadd.f32 %v827, %v991
          %v1021 = vadd.f32 %v828, %v994
          %v1022 = vadd.f32 %v829, %v996
          %v1023 = vadd.f32 %v830, %v999
          %v1024 = vadd.f32 %v831, %v1001
          %v1025 = vadd.f32 %v832, %v1004
          %v1026 = vadd.f32 %v833, %v1006
          %v1027 = vadd.f32 %v834, %v1009
          %v1028 = vadd.f32 %v835, %v1011
          %1029 = vst [vmem:[#allocation2] sm:$0xff] %v1013
          %1030 = vst [vmem:[#allocation2 + $0x8] sm:$0xff] %v1014
          %1031 = vst [vmem:[#allocation2 + $0x10] sm:$0xff] %v1015
          %1032 = vst [vmem:[#allocation2 + $0x18] sm:$0xff] %v1016
          %1033 = vst [vmem:[#allocation2 + $0x20] sm:$0xff] %v1017
          %1034 = vst [vmem:[#allocation2 + $0x28] sm:$0xff] %v1018
          %1035 = vst [vmem:[#allocation2 + $0x30] sm:$0xff] %v1019
          %1036 = vst [vmem:[#allocation2 + $0x38] sm:$0xff] %v1020
          %1037 = vst [vmem:[#allocation2 + $0x40] sm:$0xff] %v1021
          %1038 = vst [vmem:[#allocation2 + $0x48] sm:$0xff] %v1022
          %1039 = vst [vmem:[#allocation2 + $0x50] sm:$0xff] %v1023
          %1040 = vst [vmem:[#allocation2 + $0x58] sm:$0xff] %v1024
          %1041 = vst [vmem:[#allocation2 + $0x60] sm:$0xff] %v1025
          %1042 = vst [vmem:[#allocation2 + $0x68] sm:$0xff] %v1026
          %1043 = vst [vmem:[#allocation2 + $0x70] sm:$0xff] %v1027
          %1044 = vst [vmem:[#allocation2 + $0x78] sm:$0xff] %v1028
        $region113: #{tpu_custom_call.1} parent=84 // pred_fallthru
          _
        %p1045 = scmp.eq.s32.totalorder %s45, 1
        // Predicated region
        $region114: #{tpu_custom_call.1} parent=84 // pred_check
          %p1046 = pneg %p1045
        $region115: #{tpu_custom_call.1} parent=84 // pred_check_branch
          %1048 = sbr.rel (%p1046) target = $region117
        $region116: #{tpu_custom_call.1} parent=84 // pred_region
          %v1049 = vld [vmem:[#allocation2] sm:$0xff]
          %v1050 = vld [vmem:[#allocation2 + $0x8] sm:$0xff]
          %v1051 = vld [vmem:[#allocation2 + $0x10] sm:$0xff]
          %v1052 = vld [vmem:[#allocation2 + $0x18] sm:$0xff]
          %v1053 = vld [vmem:[#allocation2 + $0x20] sm:$0xff]
          %v1054 = vld [vmem:[#allocation2 + $0x28] sm:$0xff]
          %v1055 = vld [vmem:[#allocation2 + $0x30] sm:$0xff]
          %v1056 = vld [vmem:[#allocation2 + $0x38] sm:$0xff]
          %v1057 = vld [vmem:[#allocation2 + $0x40] sm:$0xff]
          %v1058 = vld [vmem:[#allocation2 + $0x48] sm:$0xff]
          %v1059 = vld [vmem:[#allocation2 + $0x50] sm:$0xff]
          %v1060 = vld [vmem:[#allocation2 + $0x58] sm:$0xff]
          %v1061 = vld [vmem:[#allocation2 + $0x60] sm:$0xff]
          %v1062 = vld [vmem:[#allocation2 + $0x68] sm:$0xff]
          %v1063 = vld [vmem:[#allocation2 + $0x70] sm:$0xff]
          %v1064 = vld [vmem:[#allocation2 + $0x78] sm:$0xff]
          %v1065 = vld [vmem:[#allocation10] sm:$0xff]
          %v1066 = vld [vmem:[#allocation10 + $0x8] sm:$0xff]
          %v1067 = vld [vmem:[#allocation10 + $0x10] sm:$0xff]
          %v1068 = vld [vmem:[#allocation10 + $0x18] sm:$0xff]
          %v1069 = vld [vmem:[#allocation10 + $0x20] sm:$0xff]
          %v1070 = vld [vmem:[#allocation10 + $0x28] sm:$0xff]
          %v1071 = vld [vmem:[#allocation10 + $0x30] sm:$0xff]
          %v1072 = vld [vmem:[#allocation10 + $0x38] sm:$0xff]
          %v1073 = vld [vmem:[#allocation10 + $0x40] sm:$0xff]
          %v1074 = vld [vmem:[#allocation10 + $0x48] sm:$0xff]
          %v1075 = vld [vmem:[#allocation10 + $0x50] sm:$0xff]
          %v1076 = vld [vmem:[#allocation10 + $0x58] sm:$0xff]
          %v1077 = vld [vmem:[#allocation10 + $0x60] sm:$0xff]
          %v1078 = vld [vmem:[#allocation10 + $0x68] sm:$0xff]
          %v1079 = vld [vmem:[#allocation10 + $0x70] sm:$0xff]
          %v1080 = vld [vmem:[#allocation10 + $0x78] sm:$0xff]
          %v1081 = vld [vmem:[%s6] sm:$0x1]
          %v1083 = vperm.slane %v1081, 0
          %1085 = vmatpush.msra.mxu0 %v1080
          %1086 = vmatpush.msra.mxu0 %v1079
          %1087 = vmatpush.msra.mxu0 %v1078
          %1088 = vmatpush.msra.mxu0 %v1077
          %1089 = vmatpush.msra.mxu0 %v1076
          %1090 = vmatpush.msra.mxu0 %v1075
          %1091 = vmatpush.msra.mxu0 %v1074
          %1092 = vmatpush.msra.mxu0 %v1073
          %1093 = vmatpush.msra.mxu0 %v1072
          %1094 = vmatpush.msra.mxu0 %v1071
          %1095 = vmatpush.msra.mxu0 %v1070
          %1096 = vmatpush.msra.mxu0 %v1069
          %1097 = vmatpush.msra.mxu0 %v1068
          %1098 = vmatpush.msra.mxu0 %v1067
          %1099 = vmatpush.msra.mxu0 %v1066
          %1100 = vmatpush.msra.mxu0 %v1065
          %1101 = vmatmul.f32.gmra.mxu0 %v1049
          %v1102 = vpop.f32.mrf.mxu0
          %v1103 = vadd.f32 %v1083, %v1102
          %1104 = vmatmul.f32.gmra.mxu0 %v1050
          %v1105 = vpop.f32.mrf.mxu0
          %v1106 = vadd.f32 %v1083, %v1105
          %1107 = vmatmul.f32.gmra.mxu0 %v1051
          %v1108 = vpop.f32.mrf.mxu0
          %v1109 = vadd.f32 %v1083, %v1108
          %1110 = vmatmul.f32.gmra.mxu0 %v1052
          %v1111 = vpop.f32.mrf.mxu0
          %v1112 = vadd.f32 %v1083, %v1111
          %1113 = vmatmul.f32.gmra.mxu0 %v1053
          %v1114 = vpop.f32.mrf.mxu0
          %v1115 = vadd.f32 %v1083, %v1114
          %1116 = vmatmul.f32.gmra.mxu0 %v1054
          %v1117 = vpop.f32.mrf.mxu0
          %v1118 = vadd.f32 %v1083, %v1117
          %1119 = vmatmul.f32.gmra.mxu0 %v1055
          %v1120 = vpop.f32.mrf.mxu0
          %v1121 = vadd.f32 %v1083, %v1120
          %1122 = vmatmul.f32.gmra.mxu0 %v1056
          %v1123 = vpop.f32.mrf.mxu0
          %v1124 = vadd.f32 %v1083, %v1123
          %1125 = vmatmul.f32.gmra.mxu0 %v1057
          %v1126 = vpop.f32.mrf.mxu0
          %v1127 = vadd.f32 %v1083, %v1126
          %1128 = vmatmul.f32.gmra.mxu0 %v1058
          %v1129 = vpop.f32.mrf.mxu0
          %v1130 = vadd.f32 %v1083, %v1129
          %1131 = vmatmul.f32.gmra.mxu0 %v1059
          %v1132 = vpop.f32.mrf.mxu0
          %v1133 = vadd.f32 %v1083, %v1132
          %1134 = vmatmul.f32.gmra.mxu0 %v1060
          %v1135 = vpop.f32.mrf.mxu0
          %v1136 = vadd.f32 %v1083, %v1135
          %1137 = vmatmul.f32.gmra.mxu0 %v1061
          %v1138 = vpop.f32.mrf.mxu0
          %v1139 = vadd.f32 %v1083, %v1138
          %1140 = vmatmul.f32.gmra.mxu0 %v1062
          %v1141 = vpop.f32.mrf.mxu0
          %v1142 = vadd.f32 %v1083, %v1141
          %1143 = vmatmul.f32.gmra.mxu0 %v1063
          %v1144 = vpop.f32.mrf.mxu0
          %v1145 = vadd.f32 %v1083, %v1144
          %1146 = vmatmul.f32.gmra.mxu0 %v1064
          %v1147 = vpop.f32.mrf.mxu0
          %v1148 = vadd.f32 %v1083, %v1147
          %1149 = vdwg.mxu0
          %v1150 = vld [vmem:[%s612] sm:$0xff]
          %v1151 = vld [vmem:[%s612 + $0x8] sm:$0xff]
          %v1152 = vld [vmem:[%s612 + $0x10] sm:$0xff]
          %v1153 = vld [vmem:[%s612 + $0x18] sm:$0xff]
          %v1154 = vld [vmem:[%s612 + $0x20] sm:$0xff]
          %v1155 = vld [vmem:[%s612 + $0x28] sm:$0xff]
          %v1156 = vld [vmem:[%s612 + $0x30] sm:$0xff]
          %v1157 = vld [vmem:[%s612 + $0x38] sm:$0xff]
          %v1158 = vld [vmem:[%s612 + $0x40] sm:$0xff]
          %v1159 = vld [vmem:[%s612 + $0x48] sm:$0xff]
          %v1160 = vld [vmem:[%s612 + $0x50] sm:$0xff]
          %v1161 = vld [vmem:[%s612 + $0x58] sm:$0xff]
          %v1162 = vld [vmem:[%s612 + $0x60] sm:$0xff]
          %v1163 = vld [vmem:[%s612 + $0x68] sm:$0xff]
          %v1164 = vld [vmem:[%s612 + $0x70] sm:$0xff]
          %v1165 = vld [vmem:[%s612 + $0x78] sm:$0xff]
          %1167 = vset.pattern.permute.xlu0 0
          %1168 = vperm.xlu0 %1167, %v1150
          %v1169 = vpop.permute.xlu0 %1168
          %1172 = vset.pattern.permute.xlu0 0
          %1173 = vperm.xlu0 %1172, %v1151
          %v1174 = vpop.permute.xlu0 %1173
          %1177 = vset.pattern.permute.xlu0 0
          %1178 = vperm.xlu0 %1177, %v1152
          %v1179 = vpop.permute.xlu0 %1178
          %1182 = vset.pattern.permute.xlu0 0
          %1183 = vperm.xlu0 %1182, %v1153
          %v1184 = vpop.permute.xlu0 %1183
          %1187 = vset.pattern.permute.xlu0 0
          %1188 = vperm.xlu0 %1187, %v1154
          %v1189 = vpop.permute.xlu0 %1188
          %1192 = vset.pattern.permute.xlu0 0
          %1193 = vperm.xlu0 %1192, %v1155
          %v1194 = vpop.permute.xlu0 %1193
          %1197 = vset.pattern.permute.xlu0 0
          %1198 = vperm.xlu0 %1197, %v1156
          %v1199 = vpop.permute.xlu0 %1198
          %1202 = vset.pattern.permute.xlu0 0
          %1203 = vperm.xlu0 %1202, %v1157
          %v1204 = vpop.permute.xlu0 %1203
          %1207 = vset.pattern.permute.xlu0 0
          %1208 = vperm.xlu0 %1207, %v1158
          %v1209 = vpop.permute.xlu0 %1208
          %1212 = vset.pattern.permute.xlu0 0
          %1213 = vperm.xlu0 %1212, %v1159
          %v1214 = vpop.permute.xlu0 %1213
          %1217 = vset.pattern.permute.xlu0 0
          %1218 = vperm.xlu0 %1217, %v1160
          %v1219 = vpop.permute.xlu0 %1218
          %1222 = vset.pattern.permute.xlu0 0
          %1223 = vperm.xlu0 %1222, %v1161
          %v1224 = vpop.permute.xlu0 %1223
          %1227 = vset.pattern.permute.xlu0 0
          %1228 = vperm.xlu0 %1227, %v1162
          %v1229 = vpop.permute.xlu0 %1228
          %1232 = vset.pattern.permute.xlu0 0
          %1233 = vperm.xlu0 %1232, %v1163
          %v1234 = vpop.permute.xlu0 %1233
          %1237 = vset.pattern.permute.xlu0 0
          %1238 = vperm.xlu0 %1237, %v1164
          %v1239 = vpop.permute.xlu0 %1238
          %1242 = vset.pattern.permute.xlu0 0
          %1243 = vperm.xlu0 %1242, %v1165
          %v1244 = vpop.permute.xlu0 %1243
          %v1246 = vmul.f32 %v1103, %v1169
          %v1247 = vmul.f32 %v1106, %v1174
          %v1248 = vmul.f32 %v1109, %v1179
          %v1249 = vmul.f32 %v1112, %v1184
          %v1250 = vmul.f32 %v1115, %v1189
          %v1251 = vmul.f32 %v1118, %v1194
          %v1252 = vmul.f32 %v1121, %v1199
          %v1253 = vmul.f32 %v1124, %v1204
          %v1254 = vmul.f32 %v1127, %v1209
          %v1255 = vmul.f32 %v1130, %v1214
          %v1256 = vmul.f32 %v1133, %v1219
          %v1257 = vmul.f32 %v1136, %v1224
          %v1258 = vmul.f32 %v1139, %v1229
          %v1259 = vmul.f32 %v1142, %v1234
          %v1260 = vmul.f32 %v1145, %v1239
          %v1261 = vmul.f32 %v1148, %v1244
          %v1262 = vld [vmem:[%s539] sm:$0xf]
          %v1263 = vld [vmem:[%s539 + $0x4] sm:$0xf]
          %v1264 = vld [vmem:[%s539 + $0x8] sm:$0xf]
          %v1265 = vld [vmem:[%s539 + $0xc] sm:$0xf]
          %v1266 = vld [vmem:[%s539 + $0x10] sm:$0xf]
          %v1267 = vld [vmem:[%s539 + $0x14] sm:$0xf]
          %v1268 = vld [vmem:[%s539 + $0x18] sm:$0xf]
          %v1269 = vld [vmem:[%s539 + $0x1c] sm:$0xf]
          %v1270 = vld [vmem:[%s539 + $0x20] sm:$0xf]
          %v1271 = vld [vmem:[%s539 + $0x24] sm:$0xf]
          %v1272 = vld [vmem:[%s539 + $0x28] sm:$0xf]
          %v1273 = vld [vmem:[%s539 + $0x2c] sm:$0xf]
          %v1274 = vld [vmem:[%s539 + $0x30] sm:$0xf]
          %v1275 = vld [vmem:[%s539 + $0x34] sm:$0xf]
          %v1276 = vld [vmem:[%s539 + $0x38] sm:$0xf]
          %v1277 = vld [vmem:[%s539 + $0x3c] sm:$0xf]
          %v1278 = vld [vmem:[#allocation13] sm:$0xf]
          %v1279 = vld [vmem:[#allocation13 + $0x4] sm:$0xf]
          %v1280 = vld [vmem:[#allocation13 + $0x8] sm:$0xf]
          %v1281 = vld [vmem:[#allocation13 + $0xc] sm:$0xf]
          %v1282 = vld [vmem:[#allocation13 + $0x10] sm:$0xf]
          %v1283 = vld [vmem:[#allocation13 + $0x14] sm:$0xf]
          %v1284 = vld [vmem:[#allocation13 + $0x18] sm:$0xf]
          %v1285 = vld [vmem:[#allocation13 + $0x1c] sm:$0xf]
          %v1286 = vld [vmem:[#allocation13 + $0x20] sm:$0xf]
          %v1287 = vld [vmem:[#allocation13 + $0x24] sm:$0xf]
          %v1288 = vld [vmem:[#allocation13 + $0x28] sm:$0xf]
          %v1289 = vld [vmem:[#allocation13 + $0x2c] sm:$0xf]
          %v1290 = vld [vmem:[#allocation13 + $0x30] sm:$0xf]
          %v1291 = vld [vmem:[#allocation13 + $0x34] sm:$0xf]
          %v1292 = vld [vmem:[#allocation13 + $0x38] sm:$0xf]
          %v1293 = vld [vmem:[#allocation13 + $0x3c] sm:$0xf]
          %v1310 = vunpack.c.l.b16 %v1262
          %v1311 = vunpack.c.l.b16 %v1263
          %v1312 = vunpack.c.l.b16 %v1264
          %v1313 = vunpack.c.l.b16 %v1265
          %v1314 = vunpack.c.l.b16 %v1266
          %v1315 = vunpack.c.l.b16 %v1267
          %v1316 = vunpack.c.l.b16 %v1268
          %v1317 = vunpack.c.l.b16 %v1269
          %v1318 = vunpack.c.l.b16 %v1270
          %v1319 = vunpack.c.l.b16 %v1271
          %v1320 = vunpack.c.l.b16 %v1272
          %v1321 = vunpack.c.l.b16 %v1273
          %v1322 = vunpack.c.l.b16 %v1274
          %v1323 = vunpack.c.l.b16 %v1275
          %v1324 = vunpack.c.l.b16 %v1276
          %v1325 = vunpack.c.l.b16 %v1277
          %v1326 = vpack.c.b16 %v1311, %v1310
          %v1327 = vpack.c.b16 %v1313, %v1312
          %v1328 = vpack.c.b16 %v1315, %v1314
          %v1329 = vpack.c.b16 %v1317, %v1316
          %v1330 = vpack.c.b16 %v1319, %v1318
          %v1331 = vpack.c.b16 %v1321, %v1320
          %v1332 = vpack.c.b16 %v1323, %v1322
          %v1333 = vpack.c.b16 %v1325, %v1324
          %v1358 = vunpack.c.l.b16 %v1278
          %v1359 = vunpack.c.l.b16 %v1279
          %v1360 = vunpack.c.l.b16 %v1280
          %v1361 = vunpack.c.l.b16 %v1281
          %v1362 = vunpack.c.l.b16 %v1282
          %v1363 = vunpack.c.l.b16 %v1283
          %v1364 = vunpack.c.l.b16 %v1284
          %v1365 = vunpack.c.l.b16 %v1285
          %v1366 = vunpack.c.l.b16 %v1286
          %v1367 = vunpack.c.l.b16 %v1287
          %v1368 = vunpack.c.l.b16 %v1288
          %v1369 = vunpack.c.l.b16 %v1289
          %v1370 = vunpack.c.l.b16 %v1290
          %v1371 = vunpack.c.l.b16 %v1291
          %v1372 = vunpack.c.l.b16 %v1292
          %v1373 = vunpack.c.l.b16 %v1293
          %v1374 = vpack.c.b16 %v1359, %v1358
          %v1375 = vpack.c.b16 %v1361, %v1360
          %v1376 = vpack.c.b16 %v1363, %v1362
          %v1377 = vpack.c.b16 %v1365, %v1364
          %v1378 = vpack.c.b16 %v1367, %v1366
          %v1379 = vpack.c.b16 %v1369, %v1368
          %v1380 = vpack.c.b16 %v1371, %v1370
          %v1381 = vpack.c.b16 %v1373, %v1372
          %1390 = vmatpush.bf16.msra.mxu0 %v1381
          %1391 = vmatpush.bf16.msra.mxu0 %v1380
          %1392 = vmatpush.bf16.msra.mxu0 %v1379
          %1393 = vmatpush.bf16.msra.mxu0 %v1378
          %1394 = vmatpush.bf16.msra.mxu0 %v1377
          %1395 = vmatpush.bf16.msra.mxu0 %v1376
          %1396 = vmatpush.bf16.msra.mxu0 %v1375
          %1397 = vmatpush.bf16.msra.mxu0 %v1374
          %1398 = vmatmul.bf16.gmra.mxu0 %v1326
          %v1399 = vpop.f32.mrf.mxu0
          %v1400 = vadd.f32 0.0, %v1399
          %v1401 = vpop.f32.mrf.mxu0
          %v1402 = vadd.f32 0.0, %v1401
          %1403 = vmatmul.bf16.gmra.mxu0 %v1327
          %v1404 = vpop.f32.mrf.mxu0
          %v1405 = vadd.f32 0.0, %v1404
          %v1406 = vpop.f32.mrf.mxu0
          %v1407 = vadd.f32 0.0, %v1406
          %1408 = vmatmul.bf16.gmra.mxu0 %v1328
          %v1409 = vpop.f32.mrf.mxu0
          %v1410 = vadd.f32 0.0, %v1409
          %v1411 = vpop.f32.mrf.mxu0
          %v1412 = vadd.f32 0.0, %v1411
          %1413 = vmatmul.bf16.gmra.mxu0 %v1329
          %v1414 = vpop.f32.mrf.mxu0
          %v1415 = vadd.f32 0.0, %v1414
          %v1416 = vpop.f32.mrf.mxu0
          %v1417 = vadd.f32 0.0, %v1416
          %1418 = vmatmul.bf16.gmra.mxu0 %v1330
          %v1419 = vpop.f32.mrf.mxu0
          %v1420 = vadd.f32 0.0, %v1419
          %v1421 = vpop.f32.mrf.mxu0
          %v1422 = vadd.f32 0.0, %v1421
          %1423 = vmatmul.bf16.gmra.mxu0 %v1331
          %v1424 = vpop.f32.mrf.mxu0
          %v1425 = vadd.f32 0.0, %v1424
          %v1426 = vpop.f32.mrf.mxu0
          %v1427 = vadd.f32 0.0, %v1426
          %1428 = vmatmul.bf16.gmra.mxu0 %v1332
          %v1429 = vpop.f32.mrf.mxu0
          %v1430 = vadd.f32 0.0, %v1429
          %v1431 = vpop.f32.mrf.mxu0
          %v1432 = vadd.f32 0.0, %v1431
          %1433 = vmatmul.bf16.gmra.mxu0 %v1333
          %v1434 = vpop.f32.mrf.mxu0
          %v1435 = vadd.f32 0.0, %v1434
          %v1436 = vpop.f32.mrf.mxu0
          %v1437 = vadd.f32 0.0, %v1436
          %1438 = vdwg.mxu0
          %v1439 = vadd.f32 %v1246, %v1400
          %v1440 = vadd.f32 %v1247, %v1402
          %v1441 = vadd.f32 %v1248, %v1405
          %v1442 = vadd.f32 %v1249, %v1407
          %v1443 = vadd.f32 %v1250, %v1410
          %v1444 = vadd.f32 %v1251, %v1412
          %v1445 = vadd.f32 %v1252, %v1415
          %v1446 = vadd.f32 %v1253, %v1417
          %v1447 = vadd.f32 %v1254, %v1420
          %v1448 = vadd.f32 %v1255, %v1422
          %v1449 = vadd.f32 %v1256, %v1425
          %v1450 = vadd.f32 %v1257, %v1427
          %v1451 = vadd.f32 %v1258, %v1430
          %v1452 = vadd.f32 %v1259, %v1432
          %v1453 = vadd.f32 %v1260, %v1435
          %v1454 = vadd.f32 %v1261, %v1437
          %v1455 = vmax.f32 %v1439, 0.0
          %v1456 = vmax.f32 %v1440, 0.0
          %v1457 = vmax.f32 %v1441, 0.0
          %v1458 = vmax.f32 %v1442, 0.0
          %v1459 = vmax.f32 %v1443, 0.0
          %v1460 = vmax.f32 %v1444, 0.0
          %v1461 = vmax.f32 %v1445, 0.0
          %v1462 = vmax.f32 %v1446, 0.0
          %v1463 = vmax.f32 %v1447, 0.0
          %v1464 = vmax.f32 %v1448, 0.0
          %v1465 = vmax.f32 %v1449, 0.0
          %v1466 = vmax.f32 %v1450, 0.0
          %v1467 = vmax.f32 %v1451, 0.0
          %v1468 = vmax.f32 %v1452, 0.0
          %v1469 = vmax.f32 %v1453, 0.0
          %v1470 = vmax.f32 %v1454, 0.0
          %v1471 = vpack.c.bf16 %v1455, %v1455
          %v1472 = vpack.c.bf16 %v1456, %v1456
          %v1473 = vpack.c.bf16 %v1457, %v1457
          %v1474 = vpack.c.bf16 %v1458, %v1458
          %v1475 = vpack.c.bf16 %v1459, %v1459
          %v1476 = vpack.c.bf16 %v1460, %v1460
          %v1477 = vpack.c.bf16 %v1461, %v1461
          %v1478 = vpack.c.bf16 %v1462, %v1462
          %v1479 = vpack.c.bf16 %v1463, %v1463
          %v1480 = vpack.c.bf16 %v1464, %v1464
          %v1481 = vpack.c.bf16 %v1465, %v1465
          %v1482 = vpack.c.bf16 %v1466, %v1466
          %v1483 = vpack.c.bf16 %v1467, %v1467
          %v1484 = vpack.c.bf16 %v1468, %v1468
          %v1485 = vpack.c.bf16 %v1469, %v1469
          %v1486 = vpack.c.bf16 %v1470, %v1470
          %1487 = vst [vmem:[%s589] sm:$0xf] %v1471
          %1488 = vst [vmem:[%s589 + $0x4] sm:$0xf] %v1472
          %1489 = vst [vmem:[%s589 + $0x8] sm:$0xf] %v1473
          %1490 = vst [vmem:[%s589 + $0xc] sm:$0xf] %v1474
          %1491 = vst [vmem:[%s589 + $0x10] sm:$0xf] %v1475
          %1492 = vst [vmem:[%s589 + $0x14] sm:$0xf] %v1476
          %1493 = vst [vmem:[%s589 + $0x18] sm:$0xf] %v1477
          %1494 = vst [vmem:[%s589 + $0x1c] sm:$0xf] %v1478
          %1495 = vst [vmem:[%s589 + $0x20] sm:$0xf] %v1479
          %1496 = vst [vmem:[%s589 + $0x24] sm:$0xf] %v1480
          %1497 = vst [vmem:[%s589 + $0x28] sm:$0xf] %v1481
          %1498 = vst [vmem:[%s589 + $0x2c] sm:$0xf] %v1482
          %1499 = vst [vmem:[%s589 + $0x30] sm:$0xf] %v1483
          %1500 = vst [vmem:[%s589 + $0x34] sm:$0xf] %v1484
          %1501 = vst [vmem:[%s589 + $0x38] sm:$0xf] %v1485
          %1502 = vst [vmem:[%s589 + $0x3c] sm:$0xf] %v1486
        $region117: #{tpu_custom_call.1} parent=84 // pred_fallthru
          _
        %s1503 = sand.u32 %s261, 1
        %s1504 = scalar_lea.sflag [#allocation9], %s1503
        %s1505 = sand.u32 %s261, 1
        %s1506 = smul.addr %s1505, 64
        %s1507 = scalar_lea.vmem [#allocation14], %s1506
        // Predicated region
        $region118: #{tpu_custom_call.1} parent=84 // pred_check
          %p1508 = pneg %p271
        $region119: #{tpu_custom_call.1} parent=84 // pred_check_branch
          %1510 = sbr.rel (%p1508) target = $region121
        $region120: #{tpu_custom_call.1} parent=84 // pred_region
          %s1511 = smul.u32 16, %s44
          %1513 = vsyncadd %s1504, 0
          %s1514 = smul.addr %s1511, 4
          %s1515 = scalar_lea.hbm %s9, %s1514
          %s1516 = sshll.u32 %s1507, 4
          %s1517 = int_to_ptr.vmem [resolvable:$true] %s1516
          %s1518 = sshll.u32 %s1515, 4
          %s1519 = int_to_ptr.hbm [resolvable:$true] %s1518
          %1524 = dma.vmem_to_hbm [thread:$0]  %s1517, 1024, %s1519, %s1504, 64, 64, 4
        $region121: #{tpu_custom_call.1} parent=84 // pred_fallthru
          _
      $region85: #{tpu_custom_call.1} parent=5 // pred_fallthru
        _
      %p1525 = scmp.le.s32.totalorder 2, %s35
      // Predicated region
      $region122: #{tpu_custom_call.1} parent=5 // pred_check
        %p1526 = pneg %p1525
      $region123: #{tpu_custom_call.1} parent=5 // pred_check_branch
        %1528 = sbr.rel (%p1526) target = $region125
      $region124: #{tpu_custom_call.1} parent=5 // pred_region
        %s1529 = ssub.s32 %s35, 2
        // Predicated region
        $region126: #{tpu_custom_call.1} parent=124 // pred_check
          %p1530 = pneg %p277
        $region127: #{tpu_custom_call.1} parent=124 // pred_check_branch
          %1532 = sbr.rel (%p1530) target = $region129
        $region128: #{tpu_custom_call.1} parent=124 // pred_region
          %s1533 = sand.u32 %s262, 1
          %s1534 = scalar_lea.sflag [#allocation9], %s1533
          %s1535 = sand.u32 %s262, 1
          %s1536 = smul.addr %s1535, 64
          %s1537 = scalar_lea.vmem [#allocation14], %s1536
          %1539 = dma.done %s1534, 1024
        $region129: #{tpu_custom_call.1} parent=124 // pred_fallthru
          _
      $region125: #{tpu_custom_call.1} parent=5 // pred_fallthru
        _
    $region6: #{tpu_custom_call.1} parent=1 // loop_footer
      %s39 = sadd.s32 1, %s35
    $region7: #{tpu_custom_call.1} parent=1 // loop_footer_branch
      %34 = sbr.rel target = $region3
    $region8: #{tpu_custom_call.1} parent=1 // loop_exit
      _
    %1540 = vsyncpa [#allocation8], 1
    %s1541 = scalar_lea.sflag [#allocation8], 1
    %1542 = vsyncpa %s1541, 1
    %1543 = vsyncpa [#allocation11], 1
    %1544 = vsyncpa [#allocation9], 1
    %s1545 = scalar_lea.sflag [#allocation9], 1
    %1546 = vsyncpa %s1545, 1

</llo_original>
